<compile_context>
chip_gen: v5e
topology: v5e:2x2
jax: 0.10.0
libtpu: 0.0.40
codegen_flags: <defaults>
</compile_context>

<pallas_src>
import functools

import jax
import jax.numpy as jnp
from jax.experimental import pallas as pl
from jax.experimental.pallas import tpu as pltpu

# ----------------------------- small test config ------------------------------
B = 2
C_IN = 4
C_OUT = 8
H = W = 16
KSIZE = 3
STRIDE = 1
PAD = (KSIZE - 1) // 2                      # int(floor((k-1)/2)) like the module
H_OUT = (H + 2 * PAD - KSIZE) // STRIDE + 1
W_OUT = (W + 2 * PAD - KSIZE) // STRIDE + 1

BN_EPS = 1e-5
LANE = 128                                  # lane width for the output channels


def _round_up(x, m):
    return (x + m - 1) // m * m


# --------------------------------- kernel --------------------------------------
def _conv_bn_elu_kernel(x_ref, w_ref, scale_ref, shift_ref, o_ref, *,
                        ksize, wp, lq, stride):
    """One image: ELU( conv(x) * scale + shift ), conv-bias/BN folded.

    x_ref:     [1, NROWS, CIN_P]      f32  flattened zero-padded image rows
    w_ref:     [K*K, CIN_P, COUT_P]   bf16 per-tap weight slabs (VMEM resident)
    scale_ref: [1, COUT_P]            f32  gamma / sqrt(var + eps)
    shift_ref: [1, COUT_P]            f32  (conv_bias - mean) * scale + beta
    o_ref:     [1, LQ, COUT_P]        f32  output slab, LQ = H_out * (W + 2*pad)
    """
    cout_p = o_ref.shape[-1]
    acc = jnp.zeros((lq, cout_p), jnp.float32)
    # k*k shifted matmuls, statically unrolled; every tap reuses the same
    # VMEM-resident image block (in-kernel im2col).  Output slab row
    # q = r*wp + w_o needs input row stride*q + (kh*wp + kw).
    for kh in range(ksize):
        for kw in range(ksize):
            off = kh * wp + kw
            if stride == 1:
                xs = x_ref[0, pl.ds(off, lq), :]
            else:
                xs = x_ref[0, pl.ds(off, lq, stride), :]
            acc += jnp.dot(xs.astype(jnp.bfloat16), w_ref[kh * ksize + kw],
                           preferred_element_type=jnp.float32)
    y = acc * scale_ref[...] + shift_ref[...]        # conv bias + BN (eval) folded
    # ELU(alpha=1); clamp the exp argument so the unselected branch never NaNs.
    o_ref[0, :, :] = jnp.where(y > 0.0, y, jnp.exp(jnp.minimum(y, 0.0)) - 1.0)


# -------------------------------- wrapper ---------------------------------------
def conv_bn_elu(x, w, b, gamma, beta, running_mean, running_var,
                *, stride=STRIDE, eps=BN_EPS):
    bsz, cin, h, wi = x.shape
    cout, _, ksize, _ = w.shape
    pad = (ksize - 1) // 2
    ho = (h + 2 * pad - ksize) // stride + 1
    wo = (wi + 2 * pad - ksize) // stride + 1
    hp = h + 2 * pad
    wp = wi + 2 * pad

    cin_p = _round_up(cin, 8)                # sublane-align the contraction dim
    cout_p = _round_up(cout, LANE)           # lane-dense output tile

    # Output "slab": q = r*wp + w_o.  Columns w_o in [wo, wp) are junk rows that
    # get computed anyway (they only read zero padding) and are sliced off.
    lq = ho * wp
    max_off = (ksize - 1) * wp + (ksize - 1)
    nrows = _round_up(max(hp * wp, max_off + stride * (lq - 1) + 1), 8)

    # NCHW -> NHWC, spatial zero-pad, flatten spatial, pad channels.
    # Single layout pass; a real network would carry NHWC end-to-end and skip it.
    x_nhwc = jnp.transpose(x, (0, 2, 3, 1))
    x_pad = jnp.pad(x_nhwc, ((0, 0), (pad, pad), (pad, pad), (0, cin_p - cin)))
    x_flat = x_pad.reshape(bsz, hp * wp, cin_p)
    if nrows > hp * wp:
        x_flat = jnp.pad(x_flat, ((0, 0), (0, nrows - hp * wp), (0, 0)))
    x_flat = x_flat.astype(jnp.float32)

    # Per-tap weight slabs (k*k, cin_p, cout_p) in bf16 (MXU-native).
    w_taps = jnp.transpose(w, (2, 3, 1, 0)).reshape(ksize * ksize, cin, cout)
    w_taps = jnp.pad(w_taps, ((0, 0), (0, cin_p - cin), (0, cout_p - cout)))
    w_taps = w_taps.astype(jnp.bfloat16)

    # Fold conv bias + eval-mode BatchNorm into a single per-channel affine.
    inv_std = jax.lax.rsqrt(running_var + eps)
    scale = gamma * inv_std
    shift = (b - running_mean) * scale + beta
    scale = jnp.pad(scale, (0, cout_p - cout)).reshape(1, cout_p).astype(jnp.float32)
    shift = jnp.pad(shift, (0, cout_p - cout)).reshape(1, cout_p).astype(jnp.float32)

    kernel = functools.partial(_conv_bn_elu_kernel,
                               ksize=ksize, wp=wp, lq=lq, stride=stride)
    out = pl.pallas_call(
        kernel,
        out_shape=jax.ShapeDtypeStruct((bsz, lq, cout_p), jnp.float32),
        grid=(bsz,),
        in_specs=[
            pl.BlockSpec((1, nrows, cin_p), lambda i: (i, 0, 0)),   # streams per image
            pl.BlockSpec((ksize * ksize, cin_p, cout_p),
                         lambda i: (0, 0, 0)),                      # VMEM-resident
            pl.BlockSpec((1, cout_p), lambda i: (0, 0)),            # VMEM-resident
            pl.BlockSpec((1, cout_p), lambda i: (0, 0)),            # VMEM-resident
        ],
        out_specs=pl.BlockSpec((1, lq, cout_p), lambda i: (i, 0, 0)),
        compiler_params=pltpu.CompilerParams(
            dimension_semantics=("parallel",),
            vmem_limit_bytes=32 * 1024 * 1024),
    )(x_flat, w_taps, scale, shift)

    # Drop junk columns / channel padding, back to NCHW (one slice + transpose).
    out = out.reshape(bsz, ho, wp, cout_p)[:, :, :wo, :cout]
    return jnp.transpose(out, (0, 3, 1, 2))


# ---------------------------------- main -----------------------------------------
if __name__ == "__main__":
    key = jax.random.PRNGKey(0)
    kx, kw_, kb, kg, kbe, km, kv = jax.random.split(key, 7)
    x = jax.random.normal(kx, (B, C_IN, H, W), jnp.float32)
    w = 0.1 * jax.random.normal(kw_, (C_OUT, C_IN, KSIZE, KSIZE), jnp.float32)
    bias = 0.1 * jax.random.normal(kb, (C_OUT,), jnp.float32)
    gamma = 1.0 + 0.1 * jax.random.normal(kg, (C_OUT,), jnp.float32)
    beta = 0.1 * jax.random.normal(kbe, (C_OUT,), jnp.float32)
    running_mean = 0.1 * jax.random.normal(km, (C_OUT,), jnp.float32)
    running_var = jnp.abs(1.0 + 0.1 * jax.random.normal(kv, (C_OUT,), jnp.float32))

    fn = jax.jit(functools.partial(conv_bn_elu, stride=STRIDE, eps=BN_EPS))
    out = fn(x, w, bias, gamma, beta, running_mean, running_var)
    out = jax.block_until_ready(out)
    assert out.shape == (B, C_OUT, H_OUT, W_OUT) and out.dtype == jnp.float32

    # Pure-XLA reference (conv -> eval-mode BN -> ELU) on the same bf16-rounded
    # operands the kernel feeds to the MXU, so the check isolates kernel
    # correctness from the intended bf16 quantization.
    xr = x.astype(jnp.bfloat16).astype(jnp.float32)
    wr = w.astype(jnp.bfloat16).astype(jnp.float32)
    ref = jax.lax.conv_general_dilated(
        xr, wr, window_strides=(STRIDE, STRIDE),
        padding=((PAD, PAD), (PAD, PAD)),
        dimension_numbers=("NCHW", "OIHW", "NCHW"),
        precision=jax.lax.Precision.HIGHEST) + bias.reshape(1, -1, 1, 1)
    ref = (ref - running_mean.reshape(1, -1, 1, 1)) * (
        gamma.reshape(1, -1, 1, 1)
        * jax.lax.rsqrt(running_var.reshape(1, -1, 1, 1) + BN_EPS)
    ) + beta.reshape(1, -1, 1, 1)
    ref = jnp.where(ref > 0.0, ref, jnp.exp(jnp.minimum(ref, 0.0)) - 1.0)
    assert jnp.allclose(out, ref, atol=2e-3, rtol=2e-3), "mismatch vs XLA reference"

    print("KERNEL_OK")
</pallas_src>

<mosaic_0001>
module attributes {stable_mosaic.version = 11 : i64} {
  func.func @_conv_bn_elu_kernel(%arg0: i32, %arg1: memref<1x328x8xf32, #tpu.memory_space<vmem>>, %arg2: memref<9x8x128xbf16, #tpu.memory_space<vmem>>, %arg3: memref<1x128xf32, #tpu.memory_space<vmem>>, %arg4: memref<1x128xf32, #tpu.memory_space<vmem>>, %arg5: memref<1x288x128xf32, #tpu.memory_space<vmem>>) attributes {dimension_semantics = [#tpu.dimension_semantics<parallel>], iteration_bounds = array<i64: 2>, scalar_prefetch = 0 : i64, scratch_operands = 0 : i64, tpu.core_type = #tpu.core_type<tc>, window_params = [{transform_indices = @transform_0, window_bounds = array<i64: 1, 328, 8>}, {pipeline_mode = #tpu.pipeline_mode<synchronous>, transform_indices = @transform_1, window_bounds = array<i64: 9, 8, 128>}, {pipeline_mode = #tpu.pipeline_mode<synchronous>, transform_indices = @transform_2, window_bounds = array<i64: 1, 128>}, {pipeline_mode = #tpu.pipeline_mode<synchronous>, transform_indices = @transform_3, window_bounds = array<i64: 1, 128>}, {transform_indices = @transform_4, window_bounds = array<i64: 1, 288, 128>}]} {
    %cst = arith.constant 0.000000e+00 : f32
    %0 = vector.broadcast %cst : f32 to vector<288x128xf32>
    %c0 = arith.constant 0 : index
    %c0_0 = arith.constant 0 : index
    %c0_1 = arith.constant 0 : index
    %1 = vector.load %arg1[%c0, %c0_0, %c0_1] : memref<1x328x8xf32, #tpu.memory_space<vmem>>, vector<1x288x8xf32>
    %2 = vector.shape_cast %1 : vector<1x288x8xf32> to vector<288x8xf32>
    %3 = arith.truncf %2 : vector<288x8xf32> to vector<288x8xbf16>
    %c0_2 = arith.constant 0 : index
    %c0_3 = arith.constant 0 : index
    %c0_4 = arith.constant 0 : index
    %4 = vector.load %arg2[%c0_2, %c0_3, %c0_4] : memref<9x8x128xbf16, #tpu.memory_space<vmem>>, vector<1x8x128xbf16>
    %5 = vector.shape_cast %4 : vector<1x8x128xbf16> to vector<8x128xbf16>
    %cst_5 = arith.constant dense<0.000000e+00> : vector<288x128xf32>
    %6 = tpu.matmul %3, %5, %cst_5 {dimension_numbers = #tpu.dot_dimension_numbers<[1], [0], [0], [1], [0, 0, 1, 1], [], []>} : vector<288x8xbf16>, vector<8x128xbf16>, vector<288x128xf32> -> vector<288x128xf32>
    %7 = arith.addf %0, %6 : vector<288x128xf32>
    %c0_6 = arith.constant 0 : index
    %c1 = arith.constant 1 : index
    %c0_7 = arith.constant 0 : index
    %8 = vector.load %arg1[%c0_6, %c1, %c0_7] : memref<1x328x8xf32, #tpu.memory_space<vmem>>, vector<1x288x8xf32>
    %9 = vector.shape_cast %8 : vector<1x288x8xf32> to vector<288x8xf32>
    %10 = arith.truncf %9 : vector<288x8xf32> to vector<288x8xbf16>
    %c1_8 = arith.constant 1 : index
    %c0_9 = arith.constant 0 : index
    %c0_10 = arith.constant 0 : index
    %11 = vector.load %arg2[%c1_8, %c0_9, %c0_10] : memref<9x8x128xbf16, #tpu.memory_space<vmem>>, vector<1x8x128xbf16>
    %12 = vector.shape_cast %11 : vector<1x8x128xbf16> to vector<8x128xbf16>
    %cst_11 = arith.constant dense<0.000000e+00> : vector<288x128xf32>
    %13 = tpu.matmul %10, %12, %cst_11 {dimension_numbers = #tpu.dot_dimension_numbers<[1], [0], [0], [1], [0, 0, 1, 1], [], []>} : vector<288x8xbf16>, vector<8x128xbf16>, vector<288x128xf32> -> vector<288x128xf32>
    %14 = arith.addf %7, %13 : vector<288x128xf32>
    %c0_12 = arith.constant 0 : index
    %c2 = arith.constant 2 : index
    %c0_13 = arith.constant 0 : index
    %15 = vector.load %arg1[%c0_12, %c2, %c0_13] : memref<1x328x8xf32, #tpu.memory_space<vmem>>, vector<1x288x8xf32>
    %16 = vector.shape_cast %15 : vector<1x288x8xf32> to vector<288x8xf32>
    %17 = arith.truncf %16 : vector<288x8xf32> to vector<288x8xbf16>
    %c2_14 = arith.constant 2 : index
    %c0_15 = arith.constant 0 : index
    %c0_16 = arith.constant 0 : index
    %18 = vector.load %arg2[%c2_14, %c0_15, %c0_16] : memref<9x8x128xbf16, #tpu.memory_space<vmem>>, vector<1x8x128xbf16>
    %19 = vector.shape_cast %18 : vector<1x8x128xbf16> to vector<8x128xbf16>
    %cst_17 = arith.constant dense<0.000000e+00> : vector<288x128xf32>
    %20 = tpu.matmul %17, %19, %cst_17 {dimension_numbers = #tpu.dot_dimension_numbers<[1], [0], [0], [1], [0, 0, 1, 1], [], []>} : vector<288x8xbf16>, vector<8x128xbf16>, vector<288x128xf32> -> vector<288x128xf32>
    %21 = arith.addf %14, %20 : vector<288x128xf32>
    %c0_18 = arith.constant 0 : index
    %c18 = arith.constant 18 : index
    %c0_19 = arith.constant 0 : index
    %22 = vector.load %arg1[%c0_18, %c18, %c0_19] : memref<1x328x8xf32, #tpu.memory_space<vmem>>, vector<1x288x8xf32>
    %23 = vector.shape_cast %22 : vector<1x288x8xf32> to vector<288x8xf32>
    %24 = arith.truncf %23 : vector<288x8xf32> to vector<288x8xbf16>
    %c3 = arith.constant 3 : index
    %c0_20 = arith.constant 0 : index
    %c0_21 = arith.constant 0 : index
    %25 = vector.load %arg2[%c3, %c0_20, %c0_21] : memref<9x8x128xbf16, #tpu.memory_space<vmem>>, vector<1x8x128xbf16>
    %26 = vector.shape_cast %25 : vector<1x8x128xbf16> to vector<8x128xbf16>
    %cst_22 = arith.constant dense<0.000000e+00> : vector<288x128xf32>
    %27 = tpu.matmul %24, %26, %cst_22 {dimension_numbers = #tpu.dot_dimension_numbers<[1], [0], [0], [1], [0, 0, 1, 1], [], []>} : vector<288x8xbf16>, vector<8x128xbf16>, vector<288x128xf32> -> vector<288x128xf32>
    %28 = arith.addf %21, %27 : vector<288x128xf32>
    %c0_23 = arith.constant 0 : index
    %c19 = arith.constant 19 : index
    %c0_24 = arith.constant 0 : index
    %29 = vector.load %arg1[%c0_23, %c19, %c0_24] : memref<1x328x8xf32, #tpu.memory_space<vmem>>, vector<1x288x8xf32>
    %30 = vector.shape_cast %29 : vector<1x288x8xf32> to vector<288x8xf32>
    %31 = arith.truncf %30 : vector<288x8xf32> to vector<288x8xbf16>
    %c4 = arith.constant 4 : index
    %c0_25 = arith.constant 0 : index
    %c0_26 = arith.constant 0 : index
    %32 = vector.load %arg2[%c4, %c0_25, %c0_26] : memref<9x8x128xbf16, #tpu.memory_space<vmem>>, vector<1x8x128xbf16>
    %33 = vector.shape_cast %32 : vector<1x8x128xbf16> to vector<8x128xbf16>
    %cst_27 = arith.constant dense<0.000000e+00> : vector<288x128xf32>
    %34 = tpu.matmul %31, %33, %cst_27 {dimension_numbers = #tpu.dot_dimension_numbers<[1], [0], [0], [1], [0, 0, 1, 1], [], []>} : vector<288x8xbf16>, vector<8x128xbf16>, vector<288x128xf32> -> vector<288x128xf32>
    %35 = arith.addf %28, %34 : vector<288x128xf32>
    %c0_28 = arith.constant 0 : index
    %c20 = arith.constant 20 : index
    %c0_29 = arith.constant 0 : index
    %36 = vector.load %arg1[%c0_28, %c20, %c0_29] : memref<1x328x8xf32, #tpu.memory_space<vmem>>, vector<1x288x8xf32>
    %37 = vector.shape_cast %36 : vector<1x288x8xf32> to vector<288x8xf32>
    %38 = arith.truncf %37 : vector<288x8xf32> to vector<288x8xbf16>
    %c5 = arith.constant 5 : index
    %c0_30 = arith.constant 0 : index
    %c0_31 = arith.constant 0 : index
    %39 = vector.load %arg2[%c5, %c0_30, %c0_31] : memref<9x8x128xbf16, #tpu.memory_space<vmem>>, vector<1x8x128xbf16>
    %40 = vector.shape_cast %39 : vector<1x8x128xbf16> to vector<8x128xbf16>
    %cst_32 = arith.constant dense<0.000000e+00> : vector<288x128xf32>
    %41 = tpu.matmul %38, %40, %cst_32 {dimension_numbers = #tpu.dot_dimension_numbers<[1], [0], [0], [1], [0, 0, 1, 1], [], []>} : vector<288x8xbf16>, vector<8x128xbf16>, vector<288x128xf32> -> vector<288x128xf32>
    %42 = arith.addf %35, %41 : vector<288x128xf32>
    %c0_33 = arith.constant 0 : index
    %c36 = arith.constant 36 : index
    %c0_34 = arith.constant 0 : index
    %43 = vector.load %arg1[%c0_33, %c36, %c0_34] : memref<1x328x8xf32, #tpu.memory_space<vmem>>, vector<1x288x8xf32>
    %44 = vector.shape_cast %43 : vector<1x288x8xf32> to vector<288x8xf32>
    %45 = arith.truncf %44 : vector<288x8xf32> to vector<288x8xbf16>
    %c6 = arith.constant 6 : index
    %c0_35 = arith.constant 0 : index
    %c0_36 = arith.constant 0 : index
    %46 = vector.load %arg2[%c6, %c0_35, %c0_36] : memref<9x8x128xbf16, #tpu.memory_space<vmem>>, vector<1x8x128xbf16>
    %47 = vector.shape_cast %46 : vector<1x8x128xbf16> to vector<8x128xbf16>
    %cst_37 = arith.constant dense<0.000000e+00> : vector<288x128xf32>
    %48 = tpu.matmul %45, %47, %cst_37 {dimension_numbers = #tpu.dot_dimension_numbers<[1], [0], [0], [1], [0, 0, 1, 1], [], []>} : vector<288x8xbf16>, vector<8x128xbf16>, vector<288x128xf32> -> vector<288x128xf32>
    %49 = arith.addf %42, %48 : vector<288x128xf32>
    %c0_38 = arith.constant 0 : index
    %c37 = arith.constant 37 : index
    %c0_39 = arith.constant 0 : index
    %50 = vector.load %arg1[%c0_38, %c37, %c0_39] : memref<1x328x8xf32, #tpu.memory_space<vmem>>, vector<1x288x8xf32>
    %51 = vector.shape_cast %50 : vector<1x288x8xf32> to vector<288x8xf32>
    %52 = arith.truncf %51 : vector<288x8xf32> to vector<288x8xbf16>
    %c7 = arith.constant 7 : index
    %c0_40 = arith.constant 0 : index
    %c0_41 = arith.constant 0 : index
    %53 = vector.load %arg2[%c7, %c0_40, %c0_41] : memref<9x8x128xbf16, #tpu.memory_space<vmem>>, vector<1x8x128xbf16>
    %54 = vector.shape_cast %53 : vector<1x8x128xbf16> to vector<8x128xbf16>
    %cst_42 = arith.constant dense<0.000000e+00> : vector<288x128xf32>
    %55 = tpu.matmul %52, %54, %cst_42 {dimension_numbers = #tpu.dot_dimension_numbers<[1], [0], [0], [1], [0, 0, 1, 1], [], []>} : vector<288x8xbf16>, vector<8x128xbf16>, vector<288x128xf32> -> vector<288x128xf32>
    %56 = arith.addf %49, %55 : vector<288x128xf32>
    %c0_43 = arith.constant 0 : index
    %c38 = arith.constant 38 : index
    %c0_44 = arith.constant 0 : index
    %57 = vector.load %arg1[%c0_43, %c38, %c0_44] : memref<1x328x8xf32, #tpu.memory_space<vmem>>, vector<1x288x8xf32>
    %58 = vector.shape_cast %57 : vector<1x288x8xf32> to vector<288x8xf32>
    %59 = arith.truncf %58 : vector<288x8xf32> to vector<288x8xbf16>
    %c8 = arith.constant 8 : index
    %c0_45 = arith.constant 0 : index
    %c0_46 = arith.constant 0 : index
    %60 = vector.load %arg2[%c8, %c0_45, %c0_46] : memref<9x8x128xbf16, #tpu.memory_space<vmem>>, vector<1x8x128xbf16>
    %61 = vector.shape_cast %60 : vector<1x8x128xbf16> to vector<8x128xbf16>
    %cst_47 = arith.constant dense<0.000000e+00> : vector<288x128xf32>
    %62 = tpu.matmul %59, %61, %cst_47 {dimension_numbers = #tpu.dot_dimension_numbers<[1], [0], [0], [1], [0, 0, 1, 1], [], []>} : vector<288x8xbf16>, vector<8x128xbf16>, vector<288x128xf32> -> vector<288x128xf32>
    %63 = arith.addf %56, %62 : vector<288x128xf32>
    %c0_48 = arith.constant 0 : index
    %c0_49 = arith.constant 0 : index
    %64 = vector.load %arg3[%c0_48, %c0_49] : memref<1x128xf32, #tpu.memory_space<vmem>>, vector<1x128xf32>
    %65 = vector.broadcast %64 : vector<1x128xf32> to vector<288x128xf32>
    %66 = arith.mulf %63, %65 : vector<288x128xf32>
    %c0_50 = arith.constant 0 : index
    %c0_51 = arith.constant 0 : index
    %67 = vector.load %arg4[%c0_50, %c0_51] : memref<1x128xf32, #tpu.memory_space<vmem>>, vector<1x128xf32>
    %68 = vector.broadcast %67 : vector<1x128xf32> to vector<288x128xf32>
    %69 = arith.addf %66, %68 : vector<288x128xf32>
    %cst_52 = arith.constant 0.000000e+00 : f32
    %70 = vector.broadcast %cst_52 : f32 to vector<288x128xf32>
    %71 = arith.cmpf ogt, %69, %70 : vector<288x128xf32>
    %cst_53 = arith.constant 0.000000e+00 : f32
    %72 = vector.broadcast %cst_53 : f32 to vector<288x128xf32>
    %73 = arith.minimumf %69, %72 : vector<288x128xf32>
    %74 = math.exp %73 : vector<288x128xf32>
    %cst_54 = arith.constant 1.000000e+00 : f32
    %75 = vector.broadcast %cst_54 : f32 to vector<288x128xf32>
    %76 = arith.subf %74, %75 : vector<288x128xf32>
    %77 = arith.select %71, %69, %76 : vector<288x128xi1>, vector<288x128xf32>
    %c0_55 = arith.constant 0 : index
    %c0_56 = arith.constant 0 : index
    %c0_57 = arith.constant 0 : index
    %78 = vector.load %arg5[%c0_55, %c0_56, %c0_57] : memref<1x288x128xf32, #tpu.memory_space<vmem>>, vector<1x288x128xf32>
    %79 = vector.shape_cast %78 : vector<1x288x128xf32> to vector<288x128xf32>
    %80 = vector.shape_cast %77 : vector<288x128xf32> to vector<1x288x128xf32>
    tpu.vector_store %arg5[%c0_55, %c0_56, %c0_57], %80 {strides = array<i32>} : memref<1x288x128xf32, #tpu.memory_space<vmem>>, vector<1x288x128xf32>,
    return
  }
  func.func @transform_0(%arg0: i32) -> (i32, i32, i32) {
    %c0_i32 = arith.constant 0 : i32
    %c0_i32_0 = arith.constant 0 : i32
    %c0_i32_1 = arith.constant 0 : i32
    return %arg0, %c0_i32, %c0_i32_0 : i32, i32, i32
  }
  func.func @transform_1(%arg0: i32) -> (i32, i32, i32) {
    %c0_i32 = arith.constant 0 : i32
    %c0_i32_0 = arith.constant 0 : i32
    %c0_i32_1 = arith.constant 0 : i32
    %c0_i32_2 = arith.constant 0 : i32
    return %c0_i32, %c0_i32_0, %c0_i32_1 : i32, i32, i32
  }
  func.func @transform_2(%arg0: i32) -> (i32, i32) {
    %c0_i32 = arith.constant 0 : i32
    %c0_i32_0 = arith.constant 0 : i32
    %c0_i32_1 = arith.constant 0 : i32
    return %c0_i32, %c0_i32_0 : i32, i32
  }
  func.func @transform_3(%arg0: i32) -> (i32, i32) {
    %c0_i32 = arith.constant 0 : i32
    %c0_i32_0 = arith.constant 0 : i32
    %c0_i32_1 = arith.constant 0 : i32
    return %c0_i32, %c0_i32_0 : i32, i32
  }
  func.func @transform_4(%arg0: i32) -> (i32, i32, i32) {
    %c0_i32 = arith.constant 0 : i32
    %c0_i32_0 = arith.constant 0 : i32
    %c0_i32_1 = arith.constant 0 : i32
    return %arg0, %c0_i32, %c0_i32_0 : i32, i32, i32
  }
}

</mosaic_0001>

<llo_original>
// kernel: conv_bn_elu.1
$region0: #{conv_bn_elu.1}
  #allocation0 [shape = 'u32[]', space=smem, size = 0x4, offset = 0x4, fixed_abs, tag = 'smem constant byte address 0x4 - core index']
  #allocation1 [shape = 'u32[72,128]{1,0:T(1,128)}', space=vmem, size = 0x9000, scoped, tag = 'internal scratch']
  %s0 = inlined_call_operand.vmem [shape: f32[2,328,8], index: 0, kind: input, shape index: {}]
  %s1 = inlined_call_operand.vmem [shape: bf16[9,8,128], index: 1, kind: input, shape index: {}]
  %s2 = inlined_call_operand.vmem [shape: f32[1,128], index: 2, kind: input, shape index: {}]
  %s3 = inlined_call_operand.vmem [shape: f32[1,128], index: 3, kind: input, shape index: {}]
  %s4 = inlined_call_operand.vmem [shape: f32[2,288,128], index: 4, kind: output, shape index: {}]
  %s5 = sld [smem:[#allocation0]]
  $region49: #{conv_bn_elu.1} parent=0
    _
  %s7 = ssub.s32 1, %s5
  %s8 = scalar_select 0, %s7, %s5
  loop: start=0, step=1, limit=4
  $region2: #{conv_bn_elu.1} parent=0 // loop_pre_header
    _
  $region3: #{conv_bn_elu.1} parent=0 // loop_header
    %s10 = sphi 0, %s14
    %p11 = scmp.ge.s32.totalorder %s10, 4
    %s20 = sphi 0, %s22
    %s23 = sphi 0, %s20
    %s24 = sphi 0, %s23
    %s40 = sphi 0, %s24
    %s44 = sphi 0, %s44
    %s46 = sphi 0, %s44
    %s47 = sphi 0, %s46
    %s61 = sphi 0, %s47
    %s65 = sphi 0, %s65
    %s67 = sphi 0, %s65
    %s68 = sphi 0, %s67
    %s82 = sphi 0, %s68
    %s86 = sphi 0, %s86
    %s88 = sphi 0, %s86
    %s89 = sphi 0, %s88
    %s103 = sphi 0, %s89
    %s109 = sphi 0, %s111
    %s112 = sphi 0, %s109
    %s113 = sphi 0, %s112
    %s129 = sphi 0, %s113
  $region4: #{conv_bn_elu.1} parent=0 // loop_header_branch
    %13 = sbr.rel (%p11) target = $region8
  $region5: #{conv_bn_elu.1} parent=0 // loop_body
    %s15 = ssub.s32 %s10, 1
    %s16 = ssub.s32 %s10, 2
    %s17 = sadd.s32 %s10, 1
    %s18 = ssub.s32 %s10, %s17
    %p19 = scmp.eq.s32.totalorder %s18, 0
    %s21 = sadd.s32 %s20, 1
    %s22 = scalar_select %p19, %s20, %s21
    %p25 = pneg %p19
    %p26 = scmp.eq.s32.totalorder %s10, 1
    %p27 = por %p25, %p26
    %p28 = scmp.ne.s32.totalorder %s20, %s23
    %p29 = scmp.eq.s32.totalorder %s10, 0
    %p30 = por %p28, %p29
    %p31 = scmp.ne.s32.totalorder %s20, %s23
    %p32 = scmp.eq.s32.totalorder %s15, 1
    %p33 = por %p31, %p32
    %p34 = scmp.ne.s32.totalorder %s23, %s24
    %p35 = scmp.eq.s32.totalorder %s15, 0
    %p36 = por %p34, %p35
    %p37 = scmp.ne.s32.totalorder %s23, %s24
    %p38 = scmp.eq.s32.totalorder %s16, 1
    %p39 = por %p37, %p38
    %p41 = scmp.ne.s32.totalorder %s24, %s40
    %p42 = scmp.eq.s32.totalorder %s16, 0
    %p43 = por %p41, %p42
    %s45 = sadd.s32 %s44, 1
    %p48 = scmp.eq.s32.totalorder %s10, 1
    %p49 = scmp.ne.s32.totalorder %s44, %s46
    %p50 = scmp.eq.s32.totalorder %s10, 0
    %p51 = por %p49, %p50
    %p52 = scmp.ne.s32.totalorder %s44, %s46
    %p53 = scmp.eq.s32.totalorder %s15, 1
    %p54 = por %p52, %p53
    %p55 = scmp.ne.s32.totalorder %s46, %s47
    %p56 = scmp.eq.s32.totalorder %s15, 0
    %p57 = por %p55, %p56
    %p58 = scmp.ne.s32.totalorder %s46, %s47
    %p59 = scmp.eq.s32.totalorder %s16, 1
    %p60 = por %p58, %p59
    %p62 = scmp.ne.s32.totalorder %s47, %s61
    %p63 = scmp.eq.s32.totalorder %s16, 0
    %p64 = por %p62, %p63
    %s66 = sadd.s32 %s65, 1
    %p69 = scmp.eq.s32.totalorder %s10, 1
    %p70 = scmp.ne.s32.totalorder %s65, %s67
    %p71 = scmp.eq.s32.totalorder %s10, 0
    %p72 = por %p70, %p71
    %p73 = scmp.ne.s32.totalorder %s65, %s67
    %p74 = scmp.eq.s32.totalorder %s15, 1
    %p75 = por %p73, %p74
    %p76 = scmp.ne.s32.totalorder %s67, %s68
    %p77 = scmp.eq.s32.totalorder %s15, 0
    %p78 = por %p76, %p77
    %p79 = scmp.ne.s32.totalorder %s67, %s68
    %p80 = scmp.eq.s32.totalorder %s16, 1
    %p81 = por %p79, %p80
    %p83 = scmp.ne.s32.totalorder %s68, %s82
    %p84 = scmp.eq.s32.totalorder %s16, 0
    %p85 = por %p83, %p84
    %s87 = sadd.s32 %s86, 1
    %p90 = scmp.eq.s32.totalorder %s10, 1
    %p91 = scmp.ne.s32.totalorder %s86, %s88
    %p92 = scmp.eq.s32.totalorder %s10, 0
    %p93 = por %p91, %p92
    %p94 = scmp.ne.s32.totalorder %s86, %s88
    %p95 = scmp.eq.s32.totalorder %s15, 1
    %p96 = por %p94, %p95
    %p97 = scmp.ne.s32.totalorder %s88, %s89
    %p98 = scmp.eq.s32.totalorder %s15, 0
    %p99 = por %p97, %p98
    %p100 = scmp.ne.s32.totalorder %s88, %s89
    %p101 = scmp.eq.s32.totalorder %s16, 1
    %p102 = por %p100, %p101
    %p104 = scmp.ne.s32.totalorder %s89, %s103
    %p105 = scmp.eq.s32.totalorder %s16, 0
    %p106 = por %p104, %p105
    %s107 = ssub.s32 %s10, %s17
    %p108 = scmp.eq.s32.totalorder %s107, 0
    %s110 = sadd.s32 %s109, 1
    %s111 = scalar_select %p108, %s109, %s110
    %p114 = pneg %p108
    %p115 = scmp.eq.s32.totalorder %s10, 1
    %p116 = por %p114, %p115
    %p117 = scmp.ne.s32.totalorder %s109, %s112
    %p118 = scmp.eq.s32.totalorder %s10, 0
    %p119 = por %p117, %p118
    %p120 = scmp.ne.s32.totalorder %s109, %s112
    %p121 = scmp.eq.s32.totalorder %s15, 1
    %p122 = por %p120, %p121
    %p123 = scmp.ne.s32.totalorder %s112, %s113
    %p124 = scmp.eq.s32.totalorder %s15, 0
    %p125 = por %p123, %p124
    %p126 = scmp.ne.s32.totalorder %s112, %s113
    %p127 = scmp.eq.s32.totalorder %s16, 1
    %p128 = por %p126, %p127
    %p130 = scmp.ne.s32.totalorder %s113, %s129
    %p131 = scmp.eq.s32.totalorder %s16, 0
    %p132 = por %p130, %p131
    %p133 = scmp.le.s32.totalorder 1, %s10
    %p134 = scmp.lt.s32.totalorder %s10, 3
    %p135 = pnand %p133, %p134
    %p136 = pneg %p135
    // Predicated region
    $region9: #{conv_bn_elu.1} parent=5 // pred_check
      _
    $region10: #{conv_bn_elu.1} parent=5 // pred_check_branch
      %138 = sbr.rel (%p135) target = $region12
    $region11: #{conv_bn_elu.1} parent=5 // pred_region
      %s139 = ssub.s32 %s10, 1
      // Predicated region
      $region13: #{conv_bn_elu.1} parent=11 // pred_check
        %p140 = pneg %p57
      $region14: #{conv_bn_elu.1} parent=11 // pred_check_branch
        %142 = sbr.rel (%p140) target = $region16
      $region15: #{conv_bn_elu.1} parent=11 // pred_region
        _
      $region16: #{conv_bn_elu.1} parent=11 // pred_fallthru
        _
      // Predicated region
      $region17: #{conv_bn_elu.1} parent=11 // pred_check
        %p143 = pneg %p78
      $region18: #{conv_bn_elu.1} parent=11 // pred_check_branch
        %145 = sbr.rel (%p143) target = $region20
      $region19: #{conv_bn_elu.1} parent=11 // pred_region
        _
      $region20: #{conv_bn_elu.1} parent=11 // pred_fallthru
        _
      // Predicated region
      $region21: #{conv_bn_elu.1} parent=11 // pred_check
        %p146 = pneg %p99
      $region22: #{conv_bn_elu.1} parent=11 // pred_check_branch
        %148 = sbr.rel (%p146) target = $region24
      $region23: #{conv_bn_elu.1} parent=11 // pred_region
        _
      $region24: #{conv_bn_elu.1} parent=11 // pred_fallthru
        _
    $region12: #{conv_bn_elu.1} parent=5 // pred_fallthru
      _
    %p149 = scmp.lt.s32.totalorder %s10, 2
    // Predicated region
    $region25: #{conv_bn_elu.1} parent=5 // pred_check
      %p150 = pneg %p149
    $region26: #{conv_bn_elu.1} parent=5 // pred_check_branch
      %152 = sbr.rel (%p150) target = $region28
    $region27: #{conv_bn_elu.1} parent=5 // pred_region
      // Predicated region
      $region29: #{conv_bn_elu.1} parent=27 // pred_check
        %p153 = pneg %p30
      $region30: #{conv_bn_elu.1} parent=27 // pred_check_branch
        %155 = sbr.rel (%p153) target = $region32
      $region31: #{conv_bn_elu.1} parent=27 // pred_region
        %p156 = scmp.lt.s32.totalorder %s10, 1
        %s157 = scalar_select %p156, %s10, 1
        %s158 = smul.addr %s157, 41
        %s159 = smul.addr %s158, 8
        %s160 = scalar_lea.vmem %s0, %s159
      $region32: #{conv_bn_elu.1} parent=27 // pred_fallthru
        _
    $region28: #{conv_bn_elu.1} parent=5 // pred_fallthru
      _
    %p161 = scmp.le.s32.totalorder 1, %s10
    %p162 = scmp.lt.s32.totalorder %s10, 3
    %p163 = pnand %p161, %p162
    %p164 = pneg %p163
    // Predicated region
    $region33: #{conv_bn_elu.1} parent=5 // pred_check
      _
    $region34: #{conv_bn_elu.1} parent=5 // pred_check_branch
      %166 = sbr.rel (%p163) target = $region36
    $region35: #{conv_bn_elu.1} parent=5 // pred_region
      %s167 = ssub.s32 %s10, 1
      %p168 = scmp.lt.s32.totalorder %s15, 1
      %s169 = scalar_select %p168, %s15, 1
      %s170 = smul.addr %s169, 41
      %s171 = smul.addr %s170, 8
      %s172 = scalar_lea.vmem %s0, %s171
      %p173 = pneg %p36
      %p174 = pneg %p33
      %p175 = pneg %p57
      %p176 = pneg %p54
      %p177 = pneg %p78
      %p178 = pneg %p75
      %p179 = pneg %p99
      %p180 = pneg %p96
      %p181 = pneg %p125
      %p182 = pneg %p122
      %p183 = scmp.lt.s32.totalorder %s15, 1
      %s184 = scalar_select %p183, %s15, 1
      %s185 = smul.addr %s184, 36
      %s186 = smul.addr %s185, 8
      %s187 = scalar_lea.vmem %s4, %s186
      %p188 = scmp.lt.s32.totalorder %s15, 1
      %s189 = scalar_select %p188, %s15, 1
      %s190 = smul.addr %s189, 41
      %s191 = smul.addr %s190, 8
      %s192 = scalar_lea.vmem %s0, %s191
      %p193 = scmp.lt.s32.totalorder %s15, 1
      %s194 = scalar_select %p193, %s15, 1
      %s195 = smul.addr %s194, 36
      %s196 = smul.addr %s195, 8
      %s197 = scalar_lea.vmem %s4, %s196
      %v199 = vld [vmem:[%s192] sm:$0xff]
      %v200 = vld [vmem:[%s192 + $0x8] sm:$0xff]
      %v201 = vld [vmem:[%s192 + $0x10] sm:$0xff]
      %v202 = vld [vmem:[%s192 + $0x18] sm:$0xff]
      %v203 = vld [vmem:[%s192 + $0x20] sm:$0xff]
      %v204 = vld [vmem:[%s192 + $0x28] sm:$0xff]
      %v205 = vld [vmem:[%s192 + $0x30] sm:$0xff]
      %v206 = vld [vmem:[%s192 + $0x38] sm:$0xff]
      %v207 = vld [vmem:[%s192 + $0x40] sm:$0xff]
      %v208 = vld [vmem:[%s192 + $0x48] sm:$0xff]
      %v209 = vld [vmem:[%s192 + $0x50] sm:$0xff]
      %v210 = vld [vmem:[%s192 + $0x58] sm:$0xff]
      %v211 = vld [vmem:[%s192 + $0x60] sm:$0xff]
      %v212 = vld [vmem:[%s192 + $0x68] sm:$0xff]
      %v213 = vld [vmem:[%s192 + $0x70] sm:$0xff]
      %v214 = vld [vmem:[%s192 + $0x78] sm:$0xff]
      %v215 = vld [vmem:[%s192 + $0x80] sm:$0xff]
      %v216 = vld [vmem:[%s192 + $0x88] sm:$0xff]
      %v217 = vld [vmem:[%s192 + $0x90] sm:$0xff]
      %v218 = vld [vmem:[%s192 + $0x98] sm:$0xff]
      %v219 = vld [vmem:[%s192 + $0xa0] sm:$0xff]
      %v220 = vld [vmem:[%s192 + $0xa8] sm:$0xff]
      %v221 = vld [vmem:[%s192 + $0xb0] sm:$0xff]
      %v222 = vld [vmem:[%s192 + $0xb8] sm:$0xff]
      %v223 = vld [vmem:[%s192 + $0xc0] sm:$0xff]
      %v224 = vld [vmem:[%s192 + $0xc8] sm:$0xff]
      %v225 = vld [vmem:[%s192 + $0xd0] sm:$0xff]
      %v226 = vld [vmem:[%s192 + $0xd8] sm:$0xff]
      %v227 = vld [vmem:[%s192 + $0xe0] sm:$0xff]
      %v228 = vld [vmem:[%s192 + $0xe8] sm:$0xff]
      %v229 = vld [vmem:[%s192 + $0xf0] sm:$0xff]
      %v230 = vld [vmem:[%s192 + $0xf8] sm:$0xff]
      %v231 = vld [vmem:[%s192 + $0x100] sm:$0xff]
      %v232 = vld [vmem:[%s192 + $0x108] sm:$0xff]
      %v233 = vld [vmem:[%s192 + $0x110] sm:$0xff]
      %v234 = vld [vmem:[%s192 + $0x118] sm:$0xff]
      %v235 = vpack.c.bf16 %v200, %v199
      %v236 = vpack.c.bf16 %v202, %v201
      %v237 = vpack.c.bf16 %v204, %v203
      %v238 = vpack.c.bf16 %v206, %v205
      %v239 = vpack.c.bf16 %v208, %v207
      %v240 = vpack.c.bf16 %v210, %v209
      %v241 = vpack.c.bf16 %v212, %v211
      %v242 = vpack.c.bf16 %v214, %v213
      %v243 = vpack.c.bf16 %v216, %v215
      %v244 = vpack.c.bf16 %v218, %v217
      %v245 = vpack.c.bf16 %v220, %v219
      %v246 = vpack.c.bf16 %v222, %v221
      %v247 = vpack.c.bf16 %v224, %v223
      %v248 = vpack.c.bf16 %v226, %v225
      %v249 = vpack.c.bf16 %v228, %v227
      %v250 = vpack.c.bf16 %v230, %v229
      %v251 = vpack.c.bf16 %v232, %v231
      %v252 = vpack.c.bf16 %v234, %v233
      %v253 = vld [vmem:[%s1] sm:$0xf]
      %v254 = vld [vmem:[%s192 + $0x1] sm:$0xff]
      %v255 = vld [vmem:[%s192 + $0x9] sm:$0xff]
      %v256 = vld [vmem:[%s192 + $0x11] sm:$0xff]
      %v257 = vld [vmem:[%s192 + $0x19] sm:$0xff]
      %v258 = vld [vmem:[%s192 + $0x21] sm:$0xff]
      %v259 = vld [vmem:[%s192 + $0x29] sm:$0xff]
      %v260 = vld [vmem:[%s192 + $0x31] sm:$0xff]
      %v261 = vld [vmem:[%s192 + $0x39] sm:$0xff]
      %v262 = vld [vmem:[%s192 + $0x41] sm:$0xff]
      %v263 = vld [vmem:[%s192 + $0x49] sm:$0xff]
      %v264 = vld [vmem:[%s192 + $0x51] sm:$0xff]
      %v265 = vld [vmem:[%s192 + $0x59] sm:$0xff]
      %v266 = vld [vmem:[%s192 + $0x61] sm:$0xff]
      %v267 = vld [vmem:[%s192 + $0x69] sm:$0xff]
      %v268 = vld [vmem:[%s192 + $0x71] sm:$0xff]
      %v269 = vld [vmem:[%s192 + $0x79] sm:$0xff]
      %v270 = vld [vmem:[%s192 + $0x81] sm:$0xff]
      %v271 = vld [vmem:[%s192 + $0x89] sm:$0xff]
      %v272 = vld [vmem:[%s192 + $0x91] sm:$0xff]
      %v273 = vld [vmem:[%s192 + $0x99] sm:$0xff]
      %v274 = vld [vmem:[%s192 + $0xa1] sm:$0xff]
      %v275 = vld [vmem:[%s192 + $0xa9] sm:$0xff]
      %v276 = vld [vmem:[%s192 + $0xb1] sm:$0xff]
      %v277 = vld [vmem:[%s192 + $0xb9] sm:$0xff]
      %v278 = vld [vmem:[%s192 + $0xc1] sm:$0xff]
      %v279 = vld [vmem:[%s192 + $0xc9] sm:$0xff]
      %v280 = vld [vmem:[%s192 + $0xd1] sm:$0xff]
      %v281 = vld [vmem:[%s192 + $0xd9] sm:$0xff]
      %v282 = vld [vmem:[%s192 + $0xe1] sm:$0xff]
      %v283 = vld [vmem:[%s192 + $0xe9] sm:$0xff]
      %v284 = vld [vmem:[%s192 + $0xf1] sm:$0xff]
      %v285 = vld [vmem:[%s192 + $0xf9] sm:$0xff]
      %v286 = vld [vmem:[%s192 + $0x101] sm:$0xff]
      %v287 = vld [vmem:[%s192 + $0x109] sm:$0xff]
      %v288 = vld [vmem:[%s192 + $0x111] sm:$0xff]
      %v289 = vld [vmem:[%s192 + $0x119] sm:$0xff]
      %v290 = vpack.c.bf16 %v255, %v254
      %v291 = vpack.c.bf16 %v257, %v256
      %v292 = vpack.c.bf16 %v259, %v258
      %v293 = vpack.c.bf16 %v261, %v260
      %v294 = vpack.c.bf16 %v263, %v262
      %v295 = vpack.c.bf16 %v265, %v264
      %v296 = vpack.c.bf16 %v267, %v266
      %v297 = vpack.c.bf16 %v269, %v268
      %v298 = vpack.c.bf16 %v271, %v270
      %v299 = vpack.c.bf16 %v273, %v272
      %v300 = vpack.c.bf16 %v275, %v274
      %v301 = vpack.c.bf16 %v277, %v276
      %v302 = vpack.c.bf16 %v279, %v278
      %v303 = vpack.c.bf16 %v281, %v280
      %v304 = vpack.c.bf16 %v283, %v282
      %v305 = vpack.c.bf16 %v285, %v284
      %v306 = vpack.c.bf16 %v287, %v286
      %v307 = vpack.c.bf16 %v289, %v288
      %s308 = scalar_lea.vmem %s1, 4
      %v309 = vld [vmem:[%s308] sm:$0xf]
      %vm310 = vcmask 64512
      %v312 = vsel %vm310, %v290, 0
      %v315 = vsel %vm310, %v291, 0
      %v318 = vsel %vm310, %v292, 0
      %v321 = vsel %vm310, %v293, 0
      %v324 = vsel %vm310, %v294, 0
      %v327 = vsel %vm310, %v295, 0
      %v330 = vsel %vm310, %v296, 0
      %v333 = vsel %vm310, %v297, 0
      %v336 = vsel %vm310, %v298, 0
      %v339 = vsel %vm310, %v299, 0
      %v342 = vsel %vm310, %v300, 0
      %v345 = vsel %vm310, %v301, 0
      %v348 = vsel %vm310, %v302, 0
      %v351 = vsel %vm310, %v303, 0
      %v354 = vsel %vm310, %v304, 0
      %v357 = vsel %vm310, %v305, 0
      %v360 = vsel %vm310, %v306, 0
      %v363 = vsel %vm310, %v307, 0
      %vm365 = vcmask 1043456
      %v367 = vsel %vm365, %v309, 0
      %369 = vmatpush.bf16.msra.mxu0 0
      %370 = vmatpush.bf16.msra.mxu0 0
      %371 = vmatpush.bf16.msra.mxu0 0
      %372 = vmatpush.bf16.msra.mxu0 0
      %373 = vmatpush.bf16.msra.mxu0 0
      %374 = vmatpush.bf16.msra.mxu0 0
      %375 = vmatpush.bf16.msra.mxu0 0
      %376 = vmatpush.bf16.msra.mxu0 %v367
      %377 = vmatmul.bf16.gmra.mxu0 %v312
      %v378 = vpop.f32.mrf.mxu0
      %v379 = vadd.f32 0.0, %v378
      %v380 = vpop.f32.mrf.mxu0
      %v381 = vadd.f32 0.0, %v380
      %382 = vmatmul.bf16.gmra.mxu0 %v315
      %v383 = vpop.f32.mrf.mxu0
      %v384 = vadd.f32 0.0, %v383
      %v385 = vpop.f32.mrf.mxu0
      %v386 = vadd.f32 0.0, %v385
      %387 = vmatmul.bf16.gmra.mxu0 %v318
      %v388 = vpop.f32.mrf.mxu0
      %v389 = vadd.f32 0.0, %v388
      %v390 = vpop.f32.mrf.mxu0
      %v391 = vadd.f32 0.0, %v390
      %392 = vmatmul.bf16.gmra.mxu0 %v321
      %v393 = vpop.f32.mrf.mxu0
      %v394 = vadd.f32 0.0, %v393
      %v395 = vpop.f32.mrf.mxu0
      %v396 = vadd.f32 0.0, %v395
      %397 = vmatmul.bf16.gmra.mxu0 %v324
      %v398 = vpop.f32.mrf.mxu0
      %v399 = vadd.f32 0.0, %v398
      %v400 = vpop.f32.mrf.mxu0
      %v401 = vadd.f32 0.0, %v400
      %402 = vmatmul.bf16.gmra.mxu0 %v327
      %v403 = vpop.f32.mrf.mxu0
      %v404 = vadd.f32 0.0, %v403
      %v405 = vpop.f32.mrf.mxu0
      %v406 = vadd.f32 0.0, %v405
      %407 = vmatmul.bf16.gmra.mxu0 %v330
      %v408 = vpop.f32.mrf.mxu0
      %v409 = vadd.f32 0.0, %v408
      %v410 = vpop.f32.mrf.mxu0
      %v411 = vadd.f32 0.0, %v410
      %412 = vmatmul.bf16.gmra.mxu0 %v333
      %v413 = vpop.f32.mrf.mxu0
      %v414 = vadd.f32 0.0, %v413
      %v415 = vpop.f32.mrf.mxu0
      %v416 = vadd.f32 0.0, %v415
      %417 = vmatmul.bf16.gmra.mxu0 %v336
      %v418 = vpop.f32.mrf.mxu0
      %v419 = vadd.f32 0.0, %v418
      %v420 = vpop.f32.mrf.mxu0
      %v421 = vadd.f32 0.0, %v420
      %422 = vmatmul.bf16.gmra.mxu0 %v339
      %v423 = vpop.f32.mrf.mxu0
      %v424 = vadd.f32 0.0, %v423
      %v425 = vpop.f32.mrf.mxu0
      %v426 = vadd.f32 0.0, %v425
      %427 = vmatmul.bf16.gmra.mxu0 %v342
      %v428 = vpop.f32.mrf.mxu0
      %v429 = vadd.f32 0.0, %v428
      %v430 = vpop.f32.mrf.mxu0
      %v431 = vadd.f32 0.0, %v430
      %432 = vmatmul.bf16.gmra.mxu0 %v345
      %v433 = vpop.f32.mrf.mxu0
      %v434 = vadd.f32 0.0, %v433
      %v435 = vpop.f32.mrf.mxu0
      %v436 = vadd.f32 0.0, %v435
      %437 = vmatmul.bf16.gmra.mxu0 %v348
      %v438 = vpop.f32.mrf.mxu0
      %v439 = vadd.f32 0.0, %v438
      %v440 = vpop.f32.mrf.mxu0
      %v441 = vadd.f32 0.0, %v440
      %442 = vmatmul.bf16.gmra.mxu0 %v351
      %v443 = vpop.f32.mrf.mxu0
      %v444 = vadd.f32 0.0, %v443
      %v445 = vpop.f32.mrf.mxu0
      %v446 = vadd.f32 0.0, %v445
      %447 = vmatmul.bf16.gmra.mxu0 %v354
      %v448 = vpop.f32.mrf.mxu0
      %v449 = vadd.f32 0.0, %v448
      %v450 = vpop.f32.mrf.mxu0
      %v451 = vadd.f32 0.0, %v450
      %452 = vmatmul.bf16.gmra.mxu0 %v357
      %v453 = vpop.f32.mrf.mxu0
      %v454 = vadd.f32 0.0, %v453
      %v455 = vpop.f32.mrf.mxu0
      %v456 = vadd.f32 0.0, %v455
      %457 = vmatmul.bf16.gmra.mxu0 %v360
      %v458 = vpop.f32.mrf.mxu0
      %v459 = vadd.f32 0.0, %v458
      %v460 = vpop.f32.mrf.mxu0
      %v461 = vadd.f32 0.0, %v460
      %462 = vmatmul.bf16.gmra.mxu0 %v363
      %v463 = vpop.f32.mrf.mxu0
      %v464 = vadd.f32 0.0, %v463
      %v465 = vpop.f32.mrf.mxu0
      %v466 = vadd.f32 0.0, %v465
      %467 = vdwg.mxu0
      %v469 = vsel %vm310, %v235, 0
      %v472 = vsel %vm310, %v236, 0
      %v475 = vsel %vm310, %v237, 0
      %v478 = vsel %vm310, %v238, 0
      %v481 = vsel %vm310, %v239, 0
      %v484 = vsel %vm310, %v240, 0
      %v487 = vsel %vm310, %v241, 0
      %v490 = vsel %vm310, %v242, 0
      %v493 = vsel %vm310, %v243, 0
      %v496 = vsel %vm310, %v244, 0
      %v499 = vsel %vm310, %v245, 0
      %v502 = vsel %vm310, %v246, 0
      %v505 = vsel %vm310, %v247, 0
      %v508 = vsel %vm310, %v248, 0
      %v511 = vsel %vm310, %v249, 0
      %v514 = vsel %vm310, %v250, 0
      %v517 = vsel %vm310, %v251, 0
      %v520 = vsel %vm310, %v252, 0
      %v523 = vsel %vm365, %v253, 0
      %525 = vmatpush.bf16.msra.mxu0 0
      %526 = vmatpush.bf16.msra.mxu0 0
      %527 = vmatpush.bf16.msra.mxu0 0
      %528 = vmatpush.bf16.msra.mxu0 0
      %529 = vmatpush.bf16.msra.mxu0 0
      %530 = vmatpush.bf16.msra.mxu0 0
      %531 = vmatpush.bf16.msra.mxu0 0
      %532 = vmatpush.bf16.msra.mxu0 %v523
      %533 = vmatmul.bf16.gmra.mxu0 %v469
      %v534 = vpop.f32.mrf.mxu0
      %v535 = vadd.f32 %v379, %v534
      %v536 = vpop.f32.mrf.mxu0
      %v537 = vadd.f32 %v381, %v536
      %538 = vmatmul.bf16.gmra.mxu0 %v472
      %v539 = vpop.f32.mrf.mxu0
      %v540 = vadd.f32 %v384, %v539
      %v541 = vpop.f32.mrf.mxu0
      %v542 = vadd.f32 %v386, %v541
      %543 = vmatmul.bf16.gmra.mxu0 %v475
      %v544 = vpop.f32.mrf.mxu0
      %v545 = vadd.f32 %v389, %v544
      %v546 = vpop.f32.mrf.mxu0
      %v547 = vadd.f32 %v391, %v546
      %548 = vmatmul.bf16.gmra.mxu0 %v478
      %v549 = vpop.f32.mrf.mxu0
      %v550 = vadd.f32 %v394, %v549
      %v551 = vpop.f32.mrf.mxu0
      %v552 = vadd.f32 %v396, %v551
      %553 = vmatmul.bf16.gmra.mxu0 %v481
      %v554 = vpop.f32.mrf.mxu0
      %v555 = vadd.f32 %v399, %v554
      %v556 = vpop.f32.mrf.mxu0
      %v557 = vadd.f32 %v401, %v556
      %558 = vmatmul.bf16.gmra.mxu0 %v484
      %v559 = vpop.f32.mrf.mxu0
      %v560 = vadd.f32 %v404, %v559
      %v561 = vpop.f32.mrf.mxu0
      %v562 = vadd.f32 %v406, %v561
      %563 = vmatmul.bf16.gmra.mxu0 %v487
      %v564 = vpop.f32.mrf.mxu0
      %v565 = vadd.f32 %v409, %v564
      %v566 = vpop.f32.mrf.mxu0
      %v567 = vadd.f32 %v411, %v566
      %568 = vmatmul.bf16.gmra.mxu0 %v490
      %v569 = vpop.f32.mrf.mxu0
      %v570 = vadd.f32 %v414, %v569
      %v571 = vpop.f32.mrf.mxu0
      %v572 = vadd.f32 %v416, %v571
      %573 = vmatmul.bf16.gmra.mxu0 %v493
      %v574 = vpop.f32.mrf.mxu0
      %v575 = vadd.f32 %v419, %v574
      %v576 = vpop.f32.mrf.mxu0
      %v577 = vadd.f32 %v421, %v576
      %578 = vmatmul.bf16.gmra.mxu0 %v496
      %v579 = vpop.f32.mrf.mxu0
      %v580 = vadd.f32 %v424, %v579
      %v581 = vpop.f32.mrf.mxu0
      %v582 = vadd.f32 %v426, %v581
      %583 = vmatmul.bf16.gmra.mxu0 %v499
      %v584 = vpop.f32.mrf.mxu0
      %v585 = vadd.f32 %v429, %v584
      %v586 = vpop.f32.mrf.mxu0
      %v587 = vadd.f32 %v431, %v586
      %588 = vmatmul.bf16.gmra.mxu0 %v502
      %v589 = vpop.f32.mrf.mxu0
      %v590 = vadd.f32 %v434, %v589
      %v591 = vpop.f32.mrf.mxu0
      %v592 = vadd.f32 %v436, %v591
      %593 = vmatmul.bf16.gmra.mxu0 %v505
      %v594 = vpop.f32.mrf.mxu0
      %v595 = vadd.f32 %v439, %v594
      %v596 = vpop.f32.mrf.mxu0
      %v597 = vadd.f32 %v441, %v596
      %598 = vmatmul.bf16.gmra.mxu0 %v508
      %v599 = vpop.f32.mrf.mxu0
      %v600 = vadd.f32 %v444, %v599
      %v601 = vpop.f32.mrf.mxu0
      %v602 = vadd.f32 %v446, %v601
      %603 = vmatmul.bf16.gmra.mxu0 %v511
      %v604 = vpop.f32.mrf.mxu0
      %v605 = vadd.f32 %v449, %v604
      %v606 = vpop.f32.mrf.mxu0
      %v607 = vadd.f32 %v451, %v606
      %608 = vmatmul.bf16.gmra.mxu0 %v514
      %v609 = vpop.f32.mrf.mxu0
      %v610 = vadd.f32 %v454, %v609
      %v611 = vpop.f32.mrf.mxu0
      %v612 = vadd.f32 %v456, %v611
      %613 = vmatmul.bf16.gmra.mxu0 %v517
      %v614 = vpop.f32.mrf.mxu0
      %v615 = vadd.f32 %v459, %v614
      %v616 = vpop.f32.mrf.mxu0
      %v617 = vadd.f32 %v461, %v616
      %618 = vmatmul.bf16.gmra.mxu0 %v520
      %v619 = vpop.f32.mrf.mxu0
      %v620 = vadd.f32 %v464, %v619
      %v621 = vpop.f32.mrf.mxu0
      %v622 = vadd.f32 %v466, %v621
      %623 = vdwg.mxu0
      %v624 = vld [vmem:[%s192 + $0x2] sm:$0xff]
      %v625 = vld [vmem:[%s192 + $0xa] sm:$0xff]
      %v626 = vld [vmem:[%s192 + $0x12] sm:$0xff]
      %v627 = vld [vmem:[%s192 + $0x1a] sm:$0xff]
      %v628 = vld [vmem:[%s192 + $0x22] sm:$0xff]
      %v629 = vld [vmem:[%s192 + $0x2a] sm:$0xff]
      %v630 = vld [vmem:[%s192 + $0x32] sm:$0xff]
      %v631 = vld [vmem:[%s192 + $0x3a] sm:$0xff]
      %v632 = vld [vmem:[%s192 + $0x42] sm:$0xff]
      %v633 = vld [vmem:[%s192 + $0x4a] sm:$0xff]
      %v634 = vld [vmem:[%s192 + $0x52] sm:$0xff]
      %v635 = vld [vmem:[%s192 + $0x5a] sm:$0xff]
      %v636 = vld [vmem:[%s192 + $0x62] sm:$0xff]
      %v637 = vld [vmem:[%s192 + $0x6a] sm:$0xff]
      %v638 = vld [vmem:[%s192 + $0x72] sm:$0xff]
      %v639 = vld [vmem:[%s192 + $0x7a] sm:$0xff]
      %v640 = vld [vmem:[%s192 + $0x82] sm:$0xff]
      %v641 = vld [vmem:[%s192 + $0x8a] sm:$0xff]
      %v642 = vld [vmem:[%s192 + $0x92] sm:$0xff]
      %v643 = vld [vmem:[%s192 + $0x9a] sm:$0xff]
      %v644 = vld [vmem:[%s192 + $0xa2] sm:$0xff]
      %v645 = vld [vmem:[%s192 + $0xaa] sm:$0xff]
      %v646 = vld [vmem:[%s192 + $0xb2] sm:$0xff]
      %v647 = vld [vmem:[%s192 + $0xba] sm:$0xff]
      %v648 = vld [vmem:[%s192 + $0xc2] sm:$0xff]
      %v649 = vld [vmem:[%s192 + $0xca] sm:$0xff]
      %v650 = vld [vmem:[%s192 + $0xd2] sm:$0xff]
      %v651 = vld [vmem:[%s192 + $0xda] sm:$0xff]
      %v652 = vld [vmem:[%s192 + $0xe2] sm:$0xff]
      %v653 = vld [vmem:[%s192 + $0xea] sm:$0xff]
      %v654 = vld [vmem:[%s192 + $0xf2] sm:$0xff]
      %v655 = vld [vmem:[%s192 + $0xfa] sm:$0xff]
      %v656 = vld [vmem:[%s192 + $0x102] sm:$0xff]
      %v657 = vld [vmem:[%s192 + $0x10a] sm:$0xff]
      %v658 = vld [vmem:[%s192 + $0x112] sm:$0xff]
      %v659 = vld [vmem:[%s192 + $0x11a] sm:$0xff]
      %v660 = vpack.c.bf16 %v625, %v624
      %v661 = vpack.c.bf16 %v627, %v626
      %v662 = vpack.c.bf16 %v629, %v628
      %v663 = vpack.c.bf16 %v631, %v630
      %v664 = vpack.c.bf16 %v633, %v632
      %v665 = vpack.c.bf16 %v635, %v634
      %v666 = vpack.c.bf16 %v637, %v636
      %v667 = vpack.c.bf16 %v639, %v638
      %v668 = vpack.c.bf16 %v641, %v640
      %v669 = vpack.c.bf16 %v643, %v642
      %v670 = vpack.c.bf16 %v645, %v644
      %v671 = vpack.c.bf16 %v647, %v646
      %v672 = vpack.c.bf16 %v649, %v648
      %v673 = vpack.c.bf16 %v651, %v650
      %v674 = vpack.c.bf16 %v653, %v652
      %v675 = vpack.c.bf16 %v655, %v654
      %v676 = vpack.c.bf16 %v657, %v656
      %v677 = vpack.c.bf16 %v659, %v658
      %s678 = scalar_lea.vmem %s1, 8
      %v679 = vld [vmem:[%s678] sm:$0xf]
      %v681 = vsel %vm310, %v660, 0
      %v684 = vsel %vm310, %v661, 0
      %v687 = vsel %vm310, %v662, 0
      %v690 = vsel %vm310, %v663, 0
      %v693 = vsel %vm310, %v664, 0
      %v696 = vsel %vm310, %v665, 0
      %v699 = vsel %vm310, %v666, 0
      %v702 = vsel %vm310, %v667, 0
      %v705 = vsel %vm310, %v668, 0
      %v708 = vsel %vm310, %v669, 0
      %v711 = vsel %vm310, %v670, 0
      %v714 = vsel %vm310, %v671, 0
      %v717 = vsel %vm310, %v672, 0
      %v720 = vsel %vm310, %v673, 0
      %v723 = vsel %vm310, %v674, 0
      %v726 = vsel %vm310, %v675, 0
      %v729 = vsel %vm310, %v676, 0
      %v732 = vsel %vm310, %v677, 0
      %v735 = vsel %vm365, %v679, 0
      %737 = vmatpush.bf16.msra.mxu0 0
      %738 = vmatpush.bf16.msra.mxu0 0
      %739 = vmatpush.bf16.msra.mxu0 0
      %740 = vmatpush.bf16.msra.mxu0 0
      %741 = vmatpush.bf16.msra.mxu0 0
      %742 = vmatpush.bf16.msra.mxu0 0
      %743 = vmatpush.bf16.msra.mxu0 0
      %744 = vmatpush.bf16.msra.mxu0 %v735
      %745 = vmatmul.bf16.gmra.mxu0 %v681
      %v746 = vpop.f32.mrf.mxu0
      %v747 = vadd.f32 0.0, %v746
      %v748 = vpop.f32.mrf.mxu0
      %v749 = vadd.f32 0.0, %v748
      %750 = vmatmul.bf16.gmra.mxu0 %v684
      %v751 = vpop.f32.mrf.mxu0
      %v752 = vadd.f32 0.0, %v751
      %v753 = vpop.f32.mrf.mxu0
      %v754 = vadd.f32 0.0, %v753
      %755 = vmatmul.bf16.gmra.mxu0 %v687
      %v756 = vpop.f32.mrf.mxu0
      %v757 = vadd.f32 0.0, %v756
      %v758 = vpop.f32.mrf.mxu0
      %v759 = vadd.f32 0.0, %v758
      %760 = vmatmul.bf16.gmra.mxu0 %v690
      %v761 = vpop.f32.mrf.mxu0
      %v762 = vadd.f32 0.0, %v761
      %v763 = vpop.f32.mrf.mxu0
      %v764 = vadd.f32 0.0, %v763
      %765 = vmatmul.bf16.gmra.mxu0 %v693
      %v766 = vpop.f32.mrf.mxu0
      %v767 = vadd.f32 0.0, %v766
      %v768 = vpop.f32.mrf.mxu0
      %v769 = vadd.f32 0.0, %v768
      %770 = vmatmul.bf16.gmra.mxu0 %v696
      %v771 = vpop.f32.mrf.mxu0
      %v772 = vadd.f32 0.0, %v771
      %v773 = vpop.f32.mrf.mxu0
      %v774 = vadd.f32 0.0, %v773
      %775 = vmatmul.bf16.gmra.mxu0 %v699
      %v776 = vpop.f32.mrf.mxu0
      %v777 = vadd.f32 0.0, %v776
      %v778 = vpop.f32.mrf.mxu0
      %v779 = vadd.f32 0.0, %v778
      %780 = vmatmul.bf16.gmra.mxu0 %v702
      %v781 = vpop.f32.mrf.mxu0
      %v782 = vadd.f32 0.0, %v781
      %v783 = vpop.f32.mrf.mxu0
      %v784 = vadd.f32 0.0, %v783
      %785 = vmatmul.bf16.gmra.mxu0 %v705
      %v786 = vpop.f32.mrf.mxu0
      %v787 = vadd.f32 0.0, %v786
      %v788 = vpop.f32.mrf.mxu0
      %v789 = vadd.f32 0.0, %v788
      %790 = vmatmul.bf16.gmra.mxu0 %v708
      %v791 = vpop.f32.mrf.mxu0
      %v792 = vadd.f32 0.0, %v791
      %v793 = vpop.f32.mrf.mxu0
      %v794 = vadd.f32 0.0, %v793
      %795 = vmatmul.bf16.gmra.mxu0 %v711
      %v796 = vpop.f32.mrf.mxu0
      %v797 = vadd.f32 0.0, %v796
      %v798 = vpop.f32.mrf.mxu0
      %v799 = vadd.f32 0.0, %v798
      %800 = vmatmul.bf16.gmra.mxu0 %v714
      %v801 = vpop.f32.mrf.mxu0
      %v802 = vadd.f32 0.0, %v801
      %v803 = vpop.f32.mrf.mxu0
      %v804 = vadd.f32 0.0, %v803
      %805 = vmatmul.bf16.gmra.mxu0 %v717
      %v806 = vpop.f32.mrf.mxu0
      %v807 = vadd.f32 0.0, %v806
      %v808 = vpop.f32.mrf.mxu0
      %v809 = vadd.f32 0.0, %v808
      %810 = vmatmul.bf16.gmra.mxu0 %v720
      %v811 = vpop.f32.mrf.mxu0
      %v812 = vadd.f32 0.0, %v811
      %v813 = vpop.f32.mrf.mxu0
      %v814 = vadd.f32 0.0, %v813
      %815 = vmatmul.bf16.gmra.mxu0 %v723
      %v816 = vpop.f32.mrf.mxu0
      %v817 = vadd.f32 0.0, %v816
      %v818 = vpop.f32.mrf.mxu0
      %v819 = vadd.f32 0.0, %v818
      %820 = vmatmul.bf16.gmra.mxu0 %v726
      %v821 = vpop.f32.mrf.mxu0
      %v822 = vadd.f32 0.0, %v821
      %v823 = vpop.f32.mrf.mxu0
      %v824 = vadd.f32 0.0, %v823
      %825 = vmatmul.bf16.gmra.mxu0 %v729
      %v826 = vpop.f32.mrf.mxu0
      %v827 = vadd.f32 0.0, %v826
      %v828 = vpop.f32.mrf.mxu0
      %v829 = vadd.f32 0.0, %v828
      %830 = vmatmul.bf16.gmra.mxu0 %v732
      %v831 = vpop.f32.mrf.mxu0
      %v832 = vadd.f32 0.0, %v831
      %v833 = vpop.f32.mrf.mxu0
      %v834 = vadd.f32 0.0, %v833
      %835 = vdwg.mxu0
      %v836 = vadd.f32 %v535, %v747
      %v837 = vadd.f32 %v537, %v749
      %v838 = vadd.f32 %v540, %v752
      %v839 = vadd.f32 %v542, %v754
      %v840 = vadd.f32 %v545, %v757
      %v841 = vadd.f32 %v547, %v759
      %v842 = vadd.f32 %v550, %v762
      %v843 = vadd.f32 %v552, %v764
      %v844 = vadd.f32 %v555, %v767
      %v845 = vadd.f32 %v557, %v769
      %v846 = vadd.f32 %v560, %v772
      %v847 = vadd.f32 %v562, %v774
      %v848 = vadd.f32 %v565, %v777
      %v849 = vadd.f32 %v567, %v779
      %v850 = vadd.f32 %v570, %v782
      %v851 = vadd.f32 %v572, %v784
      %v852 = vadd.f32 %v575, %v787
      %v853 = vadd.f32 %v577, %v789
      %v854 = vadd.f32 %v580, %v792
      %v855 = vadd.f32 %v582, %v794
      %v856 = vadd.f32 %v585, %v797
      %v857 = vadd.f32 %v587, %v799
      %v858 = vadd.f32 %v590, %v802
      %v859 = vadd.f32 %v592, %v804
      %v860 = vadd.f32 %v595, %v807
      %v861 = vadd.f32 %v597, %v809
      %v862 = vadd.f32 %v600, %v812
      %v863 = vadd.f32 %v602, %v814
      %v864 = vadd.f32 %v605, %v817
      %v865 = vadd.f32 %v607, %v819
      %v866 = vadd.f32 %v610, %v822
      %v867 = vadd.f32 %v612, %v824
      %v868 = vadd.f32 %v615, %v827
      %v869 = vadd.f32 %v617, %v829
      %v870 = vadd.f32 %v620, %v832
      %v871 = vadd.f32 %v622, %v834
      %v872 = vld [vmem:[%s192 + $0x12] sm:$0xff]
      %v873 = vld [vmem:[%s192 + $0x1a] sm:$0xff]
      %v874 = vld [vmem:[%s192 + $0x22] sm:$0xff]
      %v875 = vld [vmem:[%s192 + $0x2a] sm:$0xff]
      %v876 = vld [vmem:[%s192 + $0x32] sm:$0xff]
      %v877 = vld [vmem:[%s192 + $0x3a] sm:$0xff]
      %v878 = vld [vmem:[%s192 + $0x42] sm:$0xff]
      %v879 = vld [vmem:[%s192 + $0x4a] sm:$0xff]
      %v880 = vld [vmem:[%s192 + $0x52] sm:$0xff]
      %v881 = vld [vmem:[%s192 + $0x5a] sm:$0xff]
      %v882 = vld [vmem:[%s192 + $0x62] sm:$0xff]
      %v883 = vld [vmem:[%s192 + $0x6a] sm:$0xff]
      %v884 = vld [vmem:[%s192 + $0x72] sm:$0xff]
      %v885 = vld [vmem:[%s192 + $0x7a] sm:$0xff]
      %v886 = vld [vmem:[%s192 + $0x82] sm:$0xff]
      %v887 = vld [vmem:[%s192 + $0x8a] sm:$0xff]
      %v888 = vld [vmem:[%s192 + $0x92] sm:$0xff]
      %v889 = vld [vmem:[%s192 + $0x9a] sm:$0xff]
      %v890 = vld [vmem:[%s192 + $0xa2] sm:$0xff]
      %v891 = vld [vmem:[%s192 + $0xaa] sm:$0xff]
      %v892 = vld [vmem:[%s192 + $0xb2] sm:$0xff]
      %v893 = vld [vmem:[%s192 + $0xba] sm:$0xff]
      %v894 = vld [vmem:[%s192 + $0xc2] sm:$0xff]
      %v895 = vld [vmem:[%s192 + $0xca] sm:$0xff]
      %v896 = vld [vmem:[%s192 + $0xd2] sm:$0xff]
      %v897 = vld [vmem:[%s192 + $0xda] sm:$0xff]
      %v898 = vld [vmem:[%s192 + $0xe2] sm:$0xff]
      %v899 = vld [vmem:[%s192 + $0xea] sm:$0xff]
      %v900 = vld [vmem:[%s192 + $0xf2] sm:$0xff]
      %v901 = vld [vmem:[%s192 + $0xfa] sm:$0xff]
      %v902 = vld [vmem:[%s192 + $0x102] sm:$0xff]
      %v903 = vld [vmem:[%s192 + $0x10a] sm:$0xff]
      %v904 = vld [vmem:[%s192 + $0x112] sm:$0xff]
      %v905 = vld [vmem:[%s192 + $0x11a] sm:$0xff]
      %v906 = vld [vmem:[%s192 + $0x122] sm:$0xff]
      %v907 = vld [vmem:[%s192 + $0x12a] sm:$0xff]
      %v908 = vpack.c.bf16 %v873, %v872
      %v909 = vpack.c.bf16 %v875, %v874
      %v910 = vpack.c.bf16 %v877, %v876
      %v911 = vpack.c.bf16 %v879, %v878
      %v912 = vpack.c.bf16 %v881, %v880
      %v913 = vpack.c.bf16 %v883, %v882
      %v914 = vpack.c.bf16 %v885, %v884
      %v915 = vpack.c.bf16 %v887, %v886
      %v916 = vpack.c.bf16 %v889, %v888
      %v917 = vpack.c.bf16 %v891, %v890
      %v918 = vpack.c.bf16 %v893, %v892
      %v919 = vpack.c.bf16 %v895, %v894
      %v920 = vpack.c.bf16 %v897, %v896
      %v921 = vpack.c.bf16 %v899, %v898
      %v922 = vpack.c.bf16 %v901, %v900
      %v923 = vpack.c.bf16 %v903, %v902
      %v924 = vpack.c.bf16 %v905, %v904
      %v925 = vpack.c.bf16 %v907, %v906
      %s926 = scalar_lea.vmem %s1, 12
      %v927 = vld [vmem:[%s926] sm:$0xf]
      %v929 = vsel %vm310, %v908, 0
      %v932 = vsel %vm310, %v909, 0
      %v935 = vsel %vm310, %v910, 0
      %v938 = vsel %vm310, %v911, 0
      %v941 = vsel %vm310, %v912, 0
      %v944 = vsel %vm310, %v913, 0
      %v947 = vsel %vm310, %v914, 0
      %v950 = vsel %vm310, %v915, 0
      %v953 = vsel %vm310, %v916, 0
      %v956 = vsel %vm310, %v917, 0
      %v959 = vsel %vm310, %v918, 0
      %v962 = vsel %vm310, %v919, 0
      %v965 = vsel %vm310, %v920, 0
      %v968 = vsel %vm310, %v921, 0
      %v971 = vsel %vm310, %v922, 0
      %v974 = vsel %vm310, %v923, 0
      %v977 = vsel %vm310, %v924, 0
      %v980 = vsel %vm310, %v925, 0
      %v983 = vsel %vm365, %v927, 0
      %985 = vmatpush.bf16.msra.mxu0 0
      %986 = vmatpush.bf16.msra.mxu0 0
      %987 = vmatpush.bf16.msra.mxu0 0
      %988 = vmatpush.bf16.msra.mxu0 0
      %989 = vmatpush.bf16.msra.mxu0 0
      %990 = vmatpush.bf16.msra.mxu0 0
      %991 = vmatpush.bf16.msra.mxu0 0
      %992 = vmatpush.bf16.msra.mxu0 %v983
      %993 = vmatmul.bf16.gmra.mxu0 %v929
      %v994 = vpop.f32.mrf.mxu0
      %v995 = vadd.f32 0.0, %v994
      %v996 = vpop.f32.mrf.mxu0
      %v997 = vadd.f32 0.0, %v996
      %998 = vmatmul.bf16.gmra.mxu0 %v932
      %v999 = vpop.f32.mrf.mxu0
      %v1000 = vadd.f32 0.0, %v999
      %v1001 = vpop.f32.mrf.mxu0
      %v1002 = vadd.f32 0.0, %v1001
      %1003 = vmatmul.bf16.gmra.mxu0 %v935
      %v1004 = vpop.f32.mrf.mxu0
      %v1005 = vadd.f32 0.0, %v1004
      %v1006 = vpop.f32.mrf.mxu0
      %v1007 = vadd.f32 0.0, %v1006
      %1008 = vmatmul.bf16.gmra.mxu0 %v938
      %v1009 = vpop.f32.mrf.mxu0
      %v1010 = vadd.f32 0.0, %v1009
      %v1011 = vpop.f32.mrf.mxu0
      %v1012 = vadd.f32 0.0, %v1011
      %1013 = vmatmul.bf16.gmra.mxu0 %v941
      %v1014 = vpop.f32.mrf.mxu0
      %v1015 = vadd.f32 0.0, %v1014
      %v1016 = vpop.f32.mrf.mxu0
      %v1017 = vadd.f32 0.0, %v1016
      %1018 = vmatmul.bf16.gmra.mxu0 %v944
      %v1019 = vpop.f32.mrf.mxu0
      %v1020 = vadd.f32 0.0, %v1019
      %v1021 = vpop.f32.mrf.mxu0
      %v1022 = vadd.f32 0.0, %v1021
      %1023 = vmatmul.bf16.gmra.mxu0 %v947
      %v1024 = vpop.f32.mrf.mxu0
      %v1025 = vadd.f32 0.0, %v1024
      %v1026 = vpop.f32.mrf.mxu0
      %v1027 = vadd.f32 0.0, %v1026
      %1028 = vmatmul.bf16.gmra.mxu0 %v950
      %v1029 = vpop.f32.mrf.mxu0
      %v1030 = vadd.f32 0.0, %v1029
      %v1031 = vpop.f32.mrf.mxu0
      %v1032 = vadd.f32 0.0, %v1031
      %1033 = vmatmul.bf16.gmra.mxu0 %v953
      %v1034 = vpop.f32.mrf.mxu0
      %v1035 = vadd.f32 0.0, %v1034
      %v1036 = vpop.f32.mrf.mxu0
      %v1037 = vadd.f32 0.0, %v1036
      %1038 = vmatmul.bf16.gmra.mxu0 %v956
      %v1039 = vpop.f32.mrf.mxu0
      %v1040 = vadd.f32 0.0, %v1039
      %v1041 = vpop.f32.mrf.mxu0
      %v1042 = vadd.f32 0.0, %v1041
      %1043 = vmatmul.bf16.gmra.mxu0 %v959
      %v1044 = vpop.f32.mrf.mxu0
      %v1045 = vadd.f32 0.0, %v1044
      %v1046 = vpop.f32.mrf.mxu0
      %v1047 = vadd.f32 0.0, %v1046
      %1048 = vmatmul.bf16.gmra.mxu0 %v962
      %v1049 = vpop.f32.mrf.mxu0
      %v1050 = vadd.f32 0.0, %v1049
      %v1051 = vpop.f32.mrf.mxu0
      %v1052 = vadd.f32 0.0, %v1051
      %1053 = vmatmul.bf16.gmra.mxu0 %v965
      %v1054 = vpop.f32.mrf.mxu0
      %v1055 = vadd.f32 0.0, %v1054
      %v1056 = vpop.f32.mrf.mxu0
      %v1057 = vadd.f32 0.0, %v1056
      %1058 = vmatmul.bf16.gmra.mxu0 %v968
      %v1059 = vpop.f32.mrf.mxu0
      %v1060 = vadd.f32 0.0, %v1059
      %v1061 = vpop.f32.mrf.mxu0
      %v1062 = vadd.f32 0.0, %v1061
      %1063 = vmatmul.bf16.gmra.mxu0 %v971
      %v1064 = vpop.f32.mrf.mxu0
      %v1065 = vadd.f32 0.0, %v1064
      %v1066 = vpop.f32.mrf.mxu0
      %v1067 = vadd.f32 0.0, %v1066
      %1068 = vmatmul.bf16.gmra.mxu0 %v974
      %v1069 = vpop.f32.mrf.mxu0
      %v1070 = vadd.f32 0.0, %v1069
      %v1071 = vpop.f32.mrf.mxu0
      %v1072 = vadd.f32 0.0, %v1071
      %1073 = vmatmul.bf16.gmra.mxu0 %v977
      %v1074 = vpop.f32.mrf.mxu0
      %v1075 = vadd.f32 0.0, %v1074
      %v1076 = vpop.f32.mrf.mxu0
      %v1077 = vadd.f32 0.0, %v1076
      %1078 = vmatmul.bf16.gmra.mxu0 %v980
      %v1079 = vpop.f32.mrf.mxu0
      %v1080 = vadd.f32 0.0, %v1079
      %v1081 = vpop.f32.mrf.mxu0
      %v1082 = vadd.f32 0.0, %v1081
      %1083 = vdwg.mxu0
      %v1084 = vadd.f32 %v836, %v995
      %v1085 = vadd.f32 %v837, %v997
      %v1086 = vadd.f32 %v838, %v1000
      %v1087 = vadd.f32 %v839, %v1002
      %v1088 = vadd.f32 %v840, %v1005
      %v1089 = vadd.f32 %v841, %v1007
      %v1090 = vadd.f32 %v842, %v1010
      %v1091 = vadd.f32 %v843, %v1012
      %v1092 = vadd.f32 %v844, %v1015
      %v1093 = vadd.f32 %v845, %v1017
      %v1094 = vadd.f32 %v846, %v1020
      %v1095 = vadd.f32 %v847, %v1022
      %v1096 = vadd.f32 %v848, %v1025
      %v1097 = vadd.f32 %v849, %v1027
      %v1098 = vadd.f32 %v850, %v1030
      %v1099 = vadd.f32 %v851, %v1032
      %v1100 = vadd.f32 %v852, %v1035
      %v1101 = vadd.f32 %v853, %v1037
      %v1102 = vadd.f32 %v854, %v1040
      %v1103 = vadd.f32 %v855, %v1042
      %v1104 = vadd.f32 %v856, %v1045
      %v1105 = vadd.f32 %v857, %v1047
      %v1106 = vadd.f32 %v858, %v1050
      %v1107 = vadd.f32 %v859, %v1052
      %v1108 = vadd.f32 %v860, %v1055
      %v1109 = vadd.f32 %v861, %v1057
      %v1110 = vadd.f32 %v862, %v1060
      %v1111 = vadd.f32 %v863, %v1062
      %v1112 = vadd.f32 %v864, %v1065
      %v1113 = vadd.f32 %v865, %v1067
      %v1114 = vadd.f32 %v866, %v1070
      %v1115 = vadd.f32 %v867, %v1072
      %v1116 = vadd.f32 %v868, %v1075
      %v1117 = vadd.f32 %v869, %v1077
      %v1118 = vadd.f32 %v870, %v1080
      %v1119 = vadd.f32 %v871, %v1082
      %v1120 = vld [vmem:[%s192 + $0x13] sm:$0xff]
      %v1121 = vld [vmem:[%s192 + $0x1b] sm:$0xff]
      %v1122 = vld [vmem:[%s192 + $0x23] sm:$0xff]
      %v1123 = vld [vmem:[%s192 + $0x2b] sm:$0xff]
      %v1124 = vld [vmem:[%s192 + $0x33] sm:$0xff]
      %v1125 = vld [vmem:[%s192 + $0x3b] sm:$0xff]
      %v1126 = vld [vmem:[%s192 + $0x43] sm:$0xff]
      %v1127 = vld [vmem:[%s192 + $0x4b] sm:$0xff]
      %v1128 = vld [vmem:[%s192 + $0x53] sm:$0xff]
      %v1129 = vld [vmem:[%s192 + $0x5b] sm:$0xff]
      %v1130 = vld [vmem:[%s192 + $0x63] sm:$0xff]
      %v1131 = vld [vmem:[%s192 + $0x6b] sm:$0xff]
      %v1132 = vld [vmem:[%s192 + $0x73] sm:$0xff]
      %v1133 = vld [vmem:[%s192 + $0x7b] sm:$0xff]
      %v1134 = vld [vmem:[%s192 + $0x83] sm:$0xff]
      %v1135 = vld [vmem:[%s192 + $0x8b] sm:$0xff]
      %v1136 = vld [vmem:[%s192 + $0x93] sm:$0xff]
      %v1137 = vld [vmem:[%s192 + $0x9b] sm:$0xff]
      %v1138 = vld [vmem:[%s192 + $0xa3] sm:$0xff]
      %v1139 = vld [vmem:[%s192 + $0xab] sm:$0xff]
      %v1140 = vld [vmem:[%s192 + $0xb3] sm:$0xff]
      %v1141 = vld [vmem:[%s192 + $0xbb] sm:$0xff]
      %v1142 = vld [vmem:[%s192 + $0xc3] sm:$0xff]
      %v1143 = vld [vmem:[%s192 + $0xcb] sm:$0xff]
      %v1144 = vld [vmem:[%s192 + $0xd3] sm:$0xff]
      %v1145 = vld [vmem:[%s192 + $0xdb] sm:$0xff]
      %v1146 = vld [vmem:[%s192 + $0xe3] sm:$0xff]
      %v1147 = vld [vmem:[%s192 + $0xeb] sm:$0xff]
      %v1148 = vld [vmem:[%s192 + $0xf3] sm:$0xff]
      %v1149 = vld [vmem:[%s192 + $0xfb] sm:$0xff]
      %v1150 = vld [vmem:[%s192 + $0x103] sm:$0xff]
      %v1151 = vld [vmem:[%s192 + $0x10b] sm:$0xff]
      %v1152 = vld [vmem:[%s192 + $0x113] sm:$0xff]
      %v1153 = vld [vmem:[%s192 + $0x11b] sm:$0xff]
      %v1154 = vld [vmem:[%s192 + $0x123] sm:$0xff]
      %v1155 = vld [vmem:[%s192 + $0x12b] sm:$0xff]
      %v1156 = vpack.c.bf16 %v1121, %v1120
      %v1157 = vpack.c.bf16 %v1123, %v1122
      %v1158 = vpack.c.bf16 %v1125, %v1124
      %v1159 = vpack.c.bf16 %v1127, %v1126
      %v1160 = vpack.c.bf16 %v1129, %v1128
      %v1161 = vpack.c.bf16 %v1131, %v1130
      %v1162 = vpack.c.bf16 %v1133, %v1132
      %v1163 = vpack.c.bf16 %v1135, %v1134
      %v1164 = vpack.c.bf16 %v1137, %v1136
      %v1165 = vpack.c.bf16 %v1139, %v1138
      %v1166 = vpack.c.bf16 %v1141, %v1140
      %v1167 = vpack.c.bf16 %v1143, %v1142
      %v1168 = vpack.c.bf16 %v1145, %v1144
      %v1169 = vpack.c.bf16 %v1147, %v1146
      %v1170 = vpack.c.bf16 %v1149, %v1148
      %v1171 = vpack.c.bf16 %v1151, %v1150
      %v1172 = vpack.c.bf16 %v1153, %v1152
      %v1173 = vpack.c.bf16 %v1155, %v1154
      %s1174 = scalar_lea.vmem %s1, 16
      %v1175 = vld [vmem:[%s1174] sm:$0xf]
      %v1177 = vsel %vm310, %v1156, 0
      %v1180 = vsel %vm310, %v1157, 0
      %v1183 = vsel %vm310, %v1158, 0
      %v1186 = vsel %vm310, %v1159, 0
      %v1189 = vsel %vm310, %v1160, 0
      %v1192 = vsel %vm310, %v1161, 0
      %v1195 = vsel %vm310, %v1162, 0
      %v1198 = vsel %vm310, %v1163, 0
      %v1201 = vsel %vm310, %v1164, 0
      %v1204 = vsel %vm310, %v1165, 0
      %v1207 = vsel %vm310, %v1166, 0
      %v1210 = vsel %vm310, %v1167, 0
      %v1213 = vsel %vm310, %v1168, 0
      %v1216 = vsel %vm310, %v1169, 0
      %v1219 = vsel %vm310, %v1170, 0
      %v1222 = vsel %vm310, %v1171, 0
      %v1225 = vsel %vm310, %v1172, 0
      %v1228 = vsel %vm310, %v1173, 0
      %v1231 = vsel %vm365, %v1175, 0
      %1233 = vmatpush.bf16.msra.mxu0 0
      %1234 = vmatpush.bf16.msra.mxu0 0
      %1235 = vmatpush.bf16.msra.mxu0 0
      %1236 = vmatpush.bf16.msra.mxu0 0
      %1237 = vmatpush.bf16.msra.mxu0 0
      %1238 = vmatpush.bf16.msra.mxu0 0
      %1239 = vmatpush.bf16.msra.mxu0 0
      %1240 = vmatpush.bf16.msra.mxu0 %v1231
      %1241 = vmatmul.bf16.gmra.mxu0 %v1177
      %v1242 = vpop.f32.mrf.mxu0
      %v1243 = vadd.f32 0.0, %v1242
      %v1244 = vpop.f32.mrf.mxu0
      %v1245 = vadd.f32 0.0, %v1244
      %1246 = vmatmul.bf16.gmra.mxu0 %v1180
      %v1247 = vpop.f32.mrf.mxu0
      %v1248 = vadd.f32 0.0, %v1247
      %v1249 = vpop.f32.mrf.mxu0
      %v1250 = vadd.f32 0.0, %v1249
      %1251 = vmatmul.bf16.gmra.mxu0 %v1183
      %v1252 = vpop.f32.mrf.mxu0
      %v1253 = vadd.f32 0.0, %v1252
      %v1254 = vpop.f32.mrf.mxu0
      %v1255 = vadd.f32 0.0, %v1254
      %1256 = vmatmul.bf16.gmra.mxu0 %v1186
      %v1257 = vpop.f32.mrf.mxu0
      %v1258 = vadd.f32 0.0, %v1257
      %v1259 = vpop.f32.mrf.mxu0
      %v1260 = vadd.f32 0.0, %v1259
      %1261 = vmatmul.bf16.gmra.mxu0 %v1189
      %v1262 = vpop.f32.mrf.mxu0
      %v1263 = vadd.f32 0.0, %v1262
      %v1264 = vpop.f32.mrf.mxu0
      %v1265 = vadd.f32 0.0, %v1264
      %1266 = vmatmul.bf16.gmra.mxu0 %v1192
      %v1267 = vpop.f32.mrf.mxu0
      %v1268 = vadd.f32 0.0, %v1267
      %v1269 = vpop.f32.mrf.mxu0
      %v1270 = vadd.f32 0.0, %v1269
      %1271 = vmatmul.bf16.gmra.mxu0 %v1195
      %v1272 = vpop.f32.mrf.mxu0
      %v1273 = vadd.f32 0.0, %v1272
      %v1274 = vpop.f32.mrf.mxu0
      %v1275 = vadd.f32 0.0, %v1274
      %1276 = vmatmul.bf16.gmra.mxu0 %v1198
      %v1277 = vpop.f32.mrf.mxu0
      %v1278 = vadd.f32 0.0, %v1277
      %v1279 = vpop.f32.mrf.mxu0
      %v1280 = vadd.f32 0.0, %v1279
      %1281 = vmatmul.bf16.gmra.mxu0 %v1201
      %v1282 = vpop.f32.mrf.mxu0
      %v1283 = vadd.f32 0.0, %v1282
      %v1284 = vpop.f32.mrf.mxu0
      %v1285 = vadd.f32 0.0, %v1284
      %1286 = vmatmul.bf16.gmra.mxu0 %v1204
      %v1287 = vpop.f32.mrf.mxu0
      %v1288 = vadd.f32 0.0, %v1287
      %v1289 = vpop.f32.mrf.mxu0
      %v1290 = vadd.f32 0.0, %v1289
      %1291 = vmatmul.bf16.gmra.mxu0 %v1207
      %v1292 = vpop.f32.mrf.mxu0
      %v1293 = vadd.f32 0.0, %v1292
      %v1294 = vpop.f32.mrf.mxu0
      %v1295 = vadd.f32 0.0, %v1294
      %1296 = vmatmul.bf16.gmra.mxu0 %v1210
      %v1297 = vpop.f32.mrf.mxu0
      %v1298 = vadd.f32 0.0, %v1297
      %v1299 = vpop.f32.mrf.mxu0
      %v1300 = vadd.f32 0.0, %v1299
      %1301 = vmatmul.bf16.gmra.mxu0 %v1213
      %v1302 = vpop.f32.mrf.mxu0
      %v1303 = vadd.f32 0.0, %v1302
      %v1304 = vpop.f32.mrf.mxu0
      %v1305 = vadd.f32 0.0, %v1304
      %1306 = vmatmul.bf16.gmra.mxu0 %v1216
      %v1307 = vpop.f32.mrf.mxu0
      %v1308 = vadd.f32 0.0, %v1307
      %v1309 = vpop.f32.mrf.mxu0
      %v1310 = vadd.f32 0.0, %v1309
      %1311 = vmatmul.bf16.gmra.mxu0 %v1219
      %v1312 = vpop.f32.mrf.mxu0
      %v1313 = vadd.f32 0.0, %v1312
      %v1314 = vpop.f32.mrf.mxu0
      %v1315 = vadd.f32 0.0, %v1314
      %1316 = vmatmul.bf16.gmra.mxu0 %v1222
      %v1317 = vpop.f32.mrf.mxu0
      %v1318 = vadd.f32 0.0, %v1317
      %v1319 = vpop.f32.mrf.mxu0
      %v1320 = vadd.f32 0.0, %v1319
      %1321 = vmatmul.bf16.gmra.mxu0 %v1225
      %v1322 = vpop.f32.mrf.mxu0
      %v1323 = vadd.f32 0.0, %v1322
      %v1324 = vpop.f32.mrf.mxu0
      %v1325 = vadd.f32 0.0, %v1324
      %1326 = vmatmul.bf16.gmra.mxu0 %v1228
      %v1327 = vpop.f32.mrf.mxu0
      %v1328 = vadd.f32 0.0, %v1327
      %v1329 = vpop.f32.mrf.mxu0
      %v1330 = vadd.f32 0.0, %v1329
      %1331 = vdwg.mxu0
      %v1332 = vadd.f32 %v1084, %v1243
      %v1333 = vadd.f32 %v1085, %v1245
      %v1334 = vadd.f32 %v1086, %v1248
      %v1335 = vadd.f32 %v1087, %v1250
      %v1336 = vadd.f32 %v1088, %v1253
      %v1337 = vadd.f32 %v1089, %v1255
      %v1338 = vadd.f32 %v1090, %v1258
      %v1339 = vadd.f32 %v1091, %v1260
      %v1340 = vadd.f32 %v1092, %v1263
      %v1341 = vadd.f32 %v1093, %v1265
      %v1342 = vadd.f32 %v1094, %v1268
      %v1343 = vadd.f32 %v1095, %v1270
      %v1344 = vadd.f32 %v1096, %v1273
      %v1345 = vadd.f32 %v1097, %v1275
      %v1346 = vadd.f32 %v1098, %v1278
      %v1347 = vadd.f32 %v1099, %v1280
      %v1348 = vadd.f32 %v1100, %v1283
      %v1349 = vadd.f32 %v1101, %v1285
      %v1350 = vadd.f32 %v1102, %v1288
      %v1351 = vadd.f32 %v1103, %v1290
      %v1352 = vadd.f32 %v1104, %v1293
      %v1353 = vadd.f32 %v1105, %v1295
      %v1354 = vadd.f32 %v1106, %v1298
      %v1355 = vadd.f32 %v1107, %v1300
      %v1356 = vadd.f32 %v1108, %v1303
      %v1357 = vadd.f32 %v1109, %v1305
      %v1358 = vadd.f32 %v1110, %v1308
      %v1359 = vadd.f32 %v1111, %v1310
      %v1360 = vadd.f32 %v1112, %v1313
      %v1361 = vadd.f32 %v1113, %v1315
      %v1362 = vadd.f32 %v1114, %v1318
      %v1363 = vadd.f32 %v1115, %v1320
      %v1364 = vadd.f32 %v1116, %v1323
      %v1365 = vadd.f32 %v1117, %v1325
      %v1366 = vadd.f32 %v1118, %v1328
      %v1367 = vadd.f32 %v1119, %v1330
      %v1368 = vld [vmem:[%s192 + $0x14] sm:$0xff]
      %v1369 = vld [vmem:[%s192 + $0x1c] sm:$0xff]
      %v1370 = vld [vmem:[%s192 + $0x24] sm:$0xff]
      %v1371 = vld [vmem:[%s192 + $0x2c] sm:$0xff]
      %v1372 = vld [vmem:[%s192 + $0x34] sm:$0xff]
      %v1373 = vld [vmem:[%s192 + $0x3c] sm:$0xff]
      %v1374 = vld [vmem:[%s192 + $0x44] sm:$0xff]
      %v1375 = vld [vmem:[%s192 + $0x4c] sm:$0xff]
      %v1376 = vld [vmem:[%s192 + $0x54] sm:$0xff]
      %v1377 = vld [vmem:[%s192 + $0x5c] sm:$0xff]
      %v1378 = vld [vmem:[%s192 + $0x64] sm:$0xff]
      %v1379 = vld [vmem:[%s192 + $0x6c] sm:$0xff]
      %v1380 = vld [vmem:[%s192 + $0x74] sm:$0xff]
      %v1381 = vld [vmem:[%s192 + $0x7c] sm:$0xff]
      %v1382 = vld [vmem:[%s192 + $0x84] sm:$0xff]
      %v1383 = vld [vmem:[%s192 + $0x8c] sm:$0xff]
      %v1384 = vld [vmem:[%s192 + $0x94] sm:$0xff]
      %v1385 = vld [vmem:[%s192 + $0x9c] sm:$0xff]
      %v1386 = vld [vmem:[%s192 + $0xa4] sm:$0xff]
      %v1387 = vld [vmem:[%s192 + $0xac] sm:$0xff]
      %v1388 = vld [vmem:[%s192 + $0xb4] sm:$0xff]
      %v1389 = vld [vmem:[%s192 + $0xbc] sm:$0xff]
      %v1390 = vld [vmem:[%s192 + $0xc4] sm:$0xff]
      %v1391 = vld [vmem:[%s192 + $0xcc] sm:$0xff]
      %v1392 = vld [vmem:[%s192 + $0xd4] sm:$0xff]
      %v1393 = vld [vmem:[%s192 + $0xdc] sm:$0xff]
      %v1394 = vld [vmem:[%s192 + $0xe4] sm:$0xff]
      %v1395 = vld [vmem:[%s192 + $0xec] sm:$0xff]
      %v1396 = vld [vmem:[%s192 + $0xf4] sm:$0xff]
      %v1397 = vld [vmem:[%s192 + $0xfc] sm:$0xff]
      %v1398 = vld [vmem:[%s192 + $0x104] sm:$0xff]
      %v1399 = vld [vmem:[%s192 + $0x10c] sm:$0xff]
      %v1400 = vld [vmem:[%s192 + $0x114] sm:$0xff]
      %v1401 = vld [vmem:[%s192 + $0x11c] sm:$0xff]
      %v1402 = vld [vmem:[%s192 + $0x124] sm:$0xff]
      %v1403 = vld [vmem:[%s192 + $0x12c] sm:$0xff]
      %v1404 = vpack.c.bf16 %v1369, %v1368
      %v1405 = vpack.c.bf16 %v1371, %v1370
      %v1406 = vpack.c.bf16 %v1373, %v1372
      %v1407 = vpack.c.bf16 %v1375, %v1374
      %v1408 = vpack.c.bf16 %v1377, %v1376
      %v1409 = vpack.c.bf16 %v1379, %v1378
      %v1410 = vpack.c.bf16 %v1381, %v1380
      %v1411 = vpack.c.bf16 %v1383, %v1382
      %v1412 = vpack.c.bf16 %v1385, %v1384
      %v1413 = vpack.c.bf16 %v1387, %v1386
      %v1414 = vpack.c.bf16 %v1389, %v1388
      %v1415 = vpack.c.bf16 %v1391, %v1390
      %v1416 = vpack.c.bf16 %v1393, %v1392
      %v1417 = vpack.c.bf16 %v1395, %v1394
      %v1418 = vpack.c.bf16 %v1397, %v1396
      %v1419 = vpack.c.bf16 %v1399, %v1398
      %v1420 = vpack.c.bf16 %v1401, %v1400
      %v1421 = vpack.c.bf16 %v1403, %v1402
      %s1422 = scalar_lea.vmem %s1, 20
      %v1423 = vld [vmem:[%s1422] sm:$0xf]
      %v1425 = vsel %vm310, %v1404, 0
      %v1428 = vsel %vm310, %v1405, 0
      %v1431 = vsel %vm310, %v1406, 0
      %v1434 = vsel %vm310, %v1407, 0
      %v1437 = vsel %vm310, %v1408, 0
      %v1440 = vsel %vm310, %v1409, 0
      %v1443 = vsel %vm310, %v1410, 0
      %v1446 = vsel %vm310, %v1411, 0
      %v1449 = vsel %vm310, %v1412, 0
      %v1452 = vsel %vm310, %v1413, 0
      %v1455 = vsel %vm310, %v1414, 0
      %v1458 = vsel %vm310, %v1415, 0
      %v1461 = vsel %vm310, %v1416, 0
      %v1464 = vsel %vm310, %v1417, 0
      %v1467 = vsel %vm310, %v1418, 0
      %v1470 = vsel %vm310, %v1419, 0
      %v1473 = vsel %vm310, %v1420, 0
      %v1476 = vsel %vm310, %v1421, 0
      %v1479 = vsel %vm365, %v1423, 0
      %1481 = vmatpush.bf16.msra.mxu0 0
      %1482 = vmatpush.bf16.msra.mxu0 0
      %1483 = vmatpush.bf16.msra.mxu0 0
      %1484 = vmatpush.bf16.msra.mxu0 0
      %1485 = vmatpush.bf16.msra.mxu0 0
      %1486 = vmatpush.bf16.msra.mxu0 0
      %1487 = vmatpush.bf16.msra.mxu0 0
      %1488 = vmatpush.bf16.msra.mxu0 %v1479
      %1489 = vmatmul.bf16.gmra.mxu0 %v1425
      %v1490 = vpop.f32.mrf.mxu0
      %v1491 = vadd.f32 0.0, %v1490
      %v1492 = vpop.f32.mrf.mxu0
      %v1493 = vadd.f32 0.0, %v1492
      %1494 = vmatmul.bf16.gmra.mxu0 %v1428
      %v1495 = vpop.f32.mrf.mxu0
      %v1496 = vadd.f32 0.0, %v1495
      %v1497 = vpop.f32.mrf.mxu0
      %v1498 = vadd.f32 0.0, %v1497
      %1499 = vmatmul.bf16.gmra.mxu0 %v1431
      %v1500 = vpop.f32.mrf.mxu0
      %v1501 = vadd.f32 0.0, %v1500
      %v1502 = vpop.f32.mrf.mxu0
      %v1503 = vadd.f32 0.0, %v1502
      %1504 = vmatmul.bf16.gmra.mxu0 %v1434
      %v1505 = vpop.f32.mrf.mxu0
      %v1506 = vadd.f32 0.0, %v1505
      %v1507 = vpop.f32.mrf.mxu0
      %v1508 = vadd.f32 0.0, %v1507
      %1509 = vmatmul.bf16.gmra.mxu0 %v1437
      %v1510 = vpop.f32.mrf.mxu0
      %v1511 = vadd.f32 0.0, %v1510
      %v1512 = vpop.f32.mrf.mxu0
      %v1513 = vadd.f32 0.0, %v1512
      %1514 = vmatmul.bf16.gmra.mxu0 %v1440
      %v1515 = vpop.f32.mrf.mxu0
      %v1516 = vadd.f32 0.0, %v1515
      %v1517 = vpop.f32.mrf.mxu0
      %v1518 = vadd.f32 0.0, %v1517
      %1519 = vmatmul.bf16.gmra.mxu0 %v1443
      %v1520 = vpop.f32.mrf.mxu0
      %v1521 = vadd.f32 0.0, %v1520
      %v1522 = vpop.f32.mrf.mxu0
      %v1523 = vadd.f32 0.0, %v1522
      %1524 = vmatmul.bf16.gmra.mxu0 %v1446
      %v1525 = vpop.f32.mrf.mxu0
      %v1526 = vadd.f32 0.0, %v1525
      %v1527 = vpop.f32.mrf.mxu0
      %v1528 = vadd.f32 0.0, %v1527
      %1529 = vmatmul.bf16.gmra.mxu0 %v1449
      %v1530 = vpop.f32.mrf.mxu0
      %v1531 = vadd.f32 0.0, %v1530
      %v1532 = vpop.f32.mrf.mxu0
      %v1533 = vadd.f32 0.0, %v1532
      %1534 = vmatmul.bf16.gmra.mxu0 %v1452
      %v1535 = vpop.f32.mrf.mxu0
      %v1536 = vadd.f32 0.0, %v1535
      %v1537 = vpop.f32.mrf.mxu0
      %v1538 = vadd.f32 0.0, %v1537
      %1539 = vmatmul.bf16.gmra.mxu0 %v1455
      %v1540 = vpop.f32.mrf.mxu0
      %v1541 = vadd.f32 0.0, %v1540
      %v1542 = vpop.f32.mrf.mxu0
      %v1543 = vadd.f32 0.0, %v1542
      %1544 = vmatmul.bf16.gmra.mxu0 %v1458
      %v1545 = vpop.f32.mrf.mxu0
      %v1546 = vadd.f32 0.0, %v1545
      %v1547 = vpop.f32.mrf.mxu0
      %v1548 = vadd.f32 0.0, %v1547
      %1549 = vmatmul.bf16.gmra.mxu0 %v1461
      %v1550 = vpop.f32.mrf.mxu0
      %v1551 = vadd.f32 0.0, %v1550
      %v1552 = vpop.f32.mrf.mxu0
      %v1553 = vadd.f32 0.0, %v1552
      %1554 = vmatmul.bf16.gmra.mxu0 %v1464
      %v1555 = vpop.f32.mrf.mxu0
      %v1556 = vadd.f32 0.0, %v1555
      %v1557 = vpop.f32.mrf.mxu0
      %v1558 = vadd.f32 0.0, %v1557
      %1559 = vmatmul.bf16.gmra.mxu0 %v1467
      %v1560 = vpop.f32.mrf.mxu0
      %v1561 = vadd.f32 0.0, %v1560
      %v1562 = vpop.f32.mrf.mxu0
      %v1563 = vadd.f32 0.0, %v1562
      %1564 = vmatmul.bf16.gmra.mxu0 %v1470
      %v1565 = vpop.f32.mrf.mxu0
      %v1566 = vadd.f32 0.0, %v1565
      %v1567 = vpop.f32.mrf.mxu0
      %v1568 = vadd.f32 0.0, %v1567
      %1569 = vmatmul.bf16.gmra.mxu0 %v1473
      %v1570 = vpop.f32.mrf.mxu0
      %v1571 = vadd.f32 0.0, %v1570
      %v1572 = vpop.f32.mrf.mxu0
      %v1573 = vadd.f32 0.0, %v1572
      %1574 = vmatmul.bf16.gmra.mxu0 %v1476
      %v1575 = vpop.f32.mrf.mxu0
      %v1576 = vadd.f32 0.0, %v1575
      %v1577 = vpop.f32.mrf.mxu0
      %v1578 = vadd.f32 0.0, %v1577
      %1579 = vdwg.mxu0
      %v1580 = vadd.f32 %v1332, %v1491
      %v1581 = vadd.f32 %v1333, %v1493
      %v1582 = vadd.f32 %v1334, %v1496
      %v1583 = vadd.f32 %v1335, %v1498
      %v1584 = vadd.f32 %v1336, %v1501
      %v1585 = vadd.f32 %v1337, %v1503
      %v1586 = vadd.f32 %v1338, %v1506
      %v1587 = vadd.f32 %v1339, %v1508
      %v1588 = vadd.f32 %v1340, %v1511
      %v1589 = vadd.f32 %v1341, %v1513
      %v1590 = vadd.f32 %v1342, %v1516
      %v1591 = vadd.f32 %v1343, %v1518
      %v1592 = vadd.f32 %v1344, %v1521
      %v1593 = vadd.f32 %v1345, %v1523
      %v1594 = vadd.f32 %v1346, %v1526
      %v1595 = vadd.f32 %v1347, %v1528
      %v1596 = vadd.f32 %v1348, %v1531
      %v1597 = vadd.f32 %v1349, %v1533
      %v1598 = vadd.f32 %v1350, %v1536
      %v1599 = vadd.f32 %v1351, %v1538
      %v1600 = vadd.f32 %v1352, %v1541
      %v1601 = vadd.f32 %v1353, %v1543
      %v1602 = vadd.f32 %v1354, %v1546
      %v1603 = vadd.f32 %v1355, %v1548
      %v1604 = vadd.f32 %v1356, %v1551
      %v1605 = vadd.f32 %v1357, %v1553
      %v1606 = vadd.f32 %v1358, %v1556
      %v1607 = vadd.f32 %v1359, %v1558
      %v1608 = vadd.f32 %v1360, %v1561
      %v1609 = vadd.f32 %v1361, %v1563
      %v1610 = vadd.f32 %v1362, %v1566
      %v1611 = vadd.f32 %v1363, %v1568
      %v1612 = vadd.f32 %v1364, %v1571
      %v1613 = vadd.f32 %v1365, %v1573
      %v1614 = vadd.f32 %v1366, %v1576
      %v1615 = vadd.f32 %v1367, %v1578
      %v1616 = vld [vmem:[%s192 + $0x24] sm:$0xff]
      %v1617 = vld [vmem:[%s192 + $0x2c] sm:$0xff]
      %v1618 = vld [vmem:[%s192 + $0x34] sm:$0xff]
      %v1619 = vld [vmem:[%s192 + $0x3c] sm:$0xff]
      %v1620 = vld [vmem:[%s192 + $0x44] sm:$0xff]
      %v1621 = vld [vmem:[%s192 + $0x4c] sm:$0xff]
      %v1622 = vld [vmem:[%s192 + $0x54] sm:$0xff]
      %v1623 = vld [vmem:[%s192 + $0x5c] sm:$0xff]
      %v1624 = vld [vmem:[%s192 + $0x64] sm:$0xff]
      %v1625 = vld [vmem:[%s192 + $0x6c] sm:$0xff]
      %v1626 = vld [vmem:[%s192 + $0x74] sm:$0xff]
      %v1627 = vld [vmem:[%s192 + $0x7c] sm:$0xff]
      %v1628 = vld [vmem:[%s192 + $0x84] sm:$0xff]
      %v1629 = vld [vmem:[%s192 + $0x8c] sm:$0xff]
      %v1630 = vld [vmem:[%s192 + $0x94] sm:$0xff]
      %v1631 = vld [vmem:[%s192 + $0x9c] sm:$0xff]
      %v1632 = vld [vmem:[%s192 + $0xa4] sm:$0xff]
      %v1633 = vld [vmem:[%s192 + $0xac] sm:$0xff]
      %v1634 = vld [vmem:[%s192 + $0xb4] sm:$0xff]
      %v1635 = vld [vmem:[%s192 + $0xbc] sm:$0xff]
      %v1636 = vld [vmem:[%s192 + $0xc4] sm:$0xff]
      %v1637 = vld [vmem:[%s192 + $0xcc] sm:$0xff]
      %v1638 = vld [vmem:[%s192 + $0xd4] sm:$0xff]
      %v1639 = vld [vmem:[%s192 + $0xdc] sm:$0xff]
      %v1640 = vld [vmem:[%s192 + $0xe4] sm:$0xff]
      %v1641 = vld [vmem:[%s192 + $0xec] sm:$0xff]
      %v1642 = vld [vmem:[%s192 + $0xf4] sm:$0xff]
      %v1643 = vld [vmem:[%s192 + $0xfc] sm:$0xff]
      %v1644 = vld [vmem:[%s192 + $0x104] sm:$0xff]
      %v1645 = vld [vmem:[%s192 + $0x10c] sm:$0xff]
      %v1646 = vld [vmem:[%s192 + $0x114] sm:$0xff]
      %v1647 = vld [vmem:[%s192 + $0x11c] sm:$0xff]
      %v1648 = vld [vmem:[%s192 + $0x124] sm:$0xff]
      %v1649 = vld [vmem:[%s192 + $0x12c] sm:$0xff]
      %v1650 = vld [vmem:[%s192 + $0x134] sm:$0xff]
      %v1651 = vld [vmem:[%s192 + $0x13c] sm:$0xff]
      %v1652 = vpack.c.bf16 %v1617, %v1616
      %v1653 = vpack.c.bf16 %v1619, %v1618
      %v1654 = vpack.c.bf16 %v1621, %v1620
      %v1655 = vpack.c.bf16 %v1623, %v1622
      %v1656 = vpack.c.bf16 %v1625, %v1624
      %v1657 = vpack.c.bf16 %v1627, %v1626
      %v1658 = vpack.c.bf16 %v1629, %v1628
      %v1659 = vpack.c.bf16 %v1631, %v1630
      %v1660 = vpack.c.bf16 %v1633, %v1632
      %v1661 = vpack.c.bf16 %v1635, %v1634
      %v1662 = vpack.c.bf16 %v1637, %v1636
      %v1663 = vpack.c.bf16 %v1639, %v1638
      %v1664 = vpack.c.bf16 %v1641, %v1640
      %v1665 = vpack.c.bf16 %v1643, %v1642
      %v1666 = vpack.c.bf16 %v1645, %v1644
      %v1667 = vpack.c.bf16 %v1647, %v1646
      %v1668 = vpack.c.bf16 %v1649, %v1648
      %v1669 = vpack.c.bf16 %v1651, %v1650
      %s1670 = scalar_lea.vmem %s1, 24
      %v1671 = vld [vmem:[%s1670] sm:$0xf]
      %v1673 = vsel %vm310, %v1652, 0
      %v1676 = vsel %vm310, %v1653, 0
      %v1679 = vsel %vm310, %v1654, 0
      %v1682 = vsel %vm310, %v1655, 0
      %v1685 = vsel %vm310, %v1656, 0
      %v1688 = vsel %vm310, %v1657, 0
      %v1691 = vsel %vm310, %v1658, 0
      %v1694 = vsel %vm310, %v1659, 0
      %v1697 = vsel %vm310, %v1660, 0
      %v1700 = vsel %vm310, %v1661, 0
      %v1703 = vsel %vm310, %v1662, 0
      %v1706 = vsel %vm310, %v1663, 0
      %v1709 = vsel %vm310, %v1664, 0
      %v1712 = vsel %vm310, %v1665, 0
      %v1715 = vsel %vm310, %v1666, 0
      %v1718 = vsel %vm310, %v1667, 0
      %v1721 = vsel %vm310, %v1668, 0
      %v1724 = vsel %vm310, %v1669, 0
      %v1727 = vsel %vm365, %v1671, 0
      %1729 = vmatpush.bf16.msra.mxu0 0
      %1730 = vmatpush.bf16.msra.mxu0 0
      %1731 = vmatpush.bf16.msra.mxu0 0
      %1732 = vmatpush.bf16.msra.mxu0 0
      %1733 = vmatpush.bf16.msra.mxu0 0
      %1734 = vmatpush.bf16.msra.mxu0 0
      %1735 = vmatpush.bf16.msra.mxu0 0
      %1736 = vmatpush.bf16.msra.mxu0 %v1727
      %1737 = vmatmul.bf16.gmra.mxu0 %v1673
      %v1738 = vpop.f32.mrf.mxu0
      %v1739 = vadd.f32 0.0, %v1738
      %v1740 = vpop.f32.mrf.mxu0
      %v1741 = vadd.f32 0.0, %v1740
      %1742 = vmatmul.bf16.gmra.mxu0 %v1676
      %v1743 = vpop.f32.mrf.mxu0
      %v1744 = vadd.f32 0.0, %v1743
      %v1745 = vpop.f32.mrf.mxu0
      %v1746 = vadd.f32 0.0, %v1745
      %1747 = vmatmul.bf16.gmra.mxu0 %v1679
      %v1748 = vpop.f32.mrf.mxu0
      %v1749 = vadd.f32 0.0, %v1748
      %v1750 = vpop.f32.mrf.mxu0
      %v1751 = vadd.f32 0.0, %v1750
      %1752 = vmatmul.bf16.gmra.mxu0 %v1682
      %v1753 = vpop.f32.mrf.mxu0
      %v1754 = vadd.f32 0.0, %v1753
      %v1755 = vpop.f32.mrf.mxu0
      %v1756 = vadd.f32 0.0, %v1755
      %1757 = vmatmul.bf16.gmra.mxu0 %v1685
      %v1758 = vpop.f32.mrf.mxu0
      %v1759 = vadd.f32 0.0, %v1758
      %v1760 = vpop.f32.mrf.mxu0
      %v1761 = vadd.f32 0.0, %v1760
      %1762 = vmatmul.bf16.gmra.mxu0 %v1688
      %v1763 = vpop.f32.mrf.mxu0
      %v1764 = vadd.f32 0.0, %v1763
      %v1765 = vpop.f32.mrf.mxu0
      %v1766 = vadd.f32 0.0, %v1765
      %1767 = vmatmul.bf16.gmra.mxu0 %v1691
      %v1768 = vpop.f32.mrf.mxu0
      %v1769 = vadd.f32 0.0, %v1768
      %v1770 = vpop.f32.mrf.mxu0
      %v1771 = vadd.f32 0.0, %v1770
      %1772 = vmatmul.bf16.gmra.mxu0 %v1694
      %v1773 = vpop.f32.mrf.mxu0
      %v1774 = vadd.f32 0.0, %v1773
      %v1775 = vpop.f32.mrf.mxu0
      %v1776 = vadd.f32 0.0, %v1775
      %1777 = vmatmul.bf16.gmra.mxu0 %v1697
      %v1778 = vpop.f32.mrf.mxu0
      %v1779 = vadd.f32 0.0, %v1778
      %v1780 = vpop.f32.mrf.mxu0
      %v1781 = vadd.f32 0.0, %v1780
      %1782 = vmatmul.bf16.gmra.mxu0 %v1700
      %v1783 = vpop.f32.mrf.mxu0
      %v1784 = vadd.f32 0.0, %v1783
      %v1785 = vpop.f32.mrf.mxu0
      %v1786 = vadd.f32 0.0, %v1785
      %1787 = vmatmul.bf16.gmra.mxu0 %v1703
      %v1788 = vpop.f32.mrf.mxu0
      %v1789 = vadd.f32 0.0, %v1788
      %v1790 = vpop.f32.mrf.mxu0
      %v1791 = vadd.f32 0.0, %v1790
      %1792 = vmatmul.bf16.gmra.mxu0 %v1706
      %v1793 = vpop.f32.mrf.mxu0
      %v1794 = vadd.f32 0.0, %v1793
      %v1795 = vpop.f32.mrf.mxu0
      %v1796 = vadd.f32 0.0, %v1795
      %1797 = vmatmul.bf16.gmra.mxu0 %v1709
      %v1798 = vpop.f32.mrf.mxu0
      %v1799 = vadd.f32 0.0, %v1798
      %v1800 = vpop.f32.mrf.mxu0
      %v1801 = vadd.f32 0.0, %v1800
      %1802 = vmatmul.bf16.gmra.mxu0 %v1712
      %v1803 = vpop.f32.mrf.mxu0
      %v1804 = vadd.f32 0.0, %v1803
      %v1805 = vpop.f32.mrf.mxu0
      %v1806 = vadd.f32 0.0, %v1805
      %1807 = vmatmul.bf16.gmra.mxu0 %v1715
      %v1808 = vpop.f32.mrf.mxu0
      %v1809 = vadd.f32 0.0, %v1808
      %v1810 = vpop.f32.mrf.mxu0
      %v1811 = vadd.f32 0.0, %v1810
      %1812 = vmatmul.bf16.gmra.mxu0 %v1718
      %v1813 = vpop.f32.mrf.mxu0
      %v1814 = vadd.f32 0.0, %v1813
      %v1815 = vpop.f32.mrf.mxu0
      %v1816 = vadd.f32 0.0, %v1815
      %1817 = vmatmul.bf16.gmra.mxu0 %v1721
      %v1818 = vpop.f32.mrf.mxu0
      %v1819 = vadd.f32 0.0, %v1818
      %v1820 = vpop.f32.mrf.mxu0
      %v1821 = vadd.f32 0.0, %v1820
      %1822 = vmatmul.bf16.gmra.mxu0 %v1724
      %v1823 = vpop.f32.mrf.mxu0
      %v1824 = vadd.f32 0.0, %v1823
      %v1825 = vpop.f32.mrf.mxu0
      %v1826 = vadd.f32 0.0, %v1825
      %1827 = vdwg.mxu0
      %v1828 = vadd.f32 %v1580, %v1739
      %v1829 = vadd.f32 %v1581, %v1741
      %v1830 = vadd.f32 %v1582, %v1744
      %v1831 = vadd.f32 %v1583, %v1746
      %v1832 = vadd.f32 %v1584, %v1749
      %v1833 = vadd.f32 %v1585, %v1751
      %v1834 = vadd.f32 %v1586, %v1754
      %v1835 = vadd.f32 %v1587, %v1756
      %v1836 = vadd.f32 %v1588, %v1759
      %v1837 = vadd.f32 %v1589, %v1761
      %v1838 = vadd.f32 %v1590, %v1764
      %v1839 = vadd.f32 %v1591, %v1766
      %v1840 = vadd.f32 %v1592, %v1769
      %v1841 = vadd.f32 %v1593, %v1771
      %v1842 = vadd.f32 %v1594, %v1774
      %v1843 = vadd.f32 %v1595, %v1776
      %v1844 = vadd.f32 %v1596, %v1779
      %v1845 = vadd.f32 %v1597, %v1781
      %v1846 = vadd.f32 %v1598, %v1784
      %v1847 = vadd.f32 %v1599, %v1786
      %v1848 = vadd.f32 %v1600, %v1789
      %v1849 = vadd.f32 %v1601, %v1791
      %v1850 = vadd.f32 %v1602, %v1794
      %v1851 = vadd.f32 %v1603, %v1796
      %v1852 = vadd.f32 %v1604, %v1799
      %v1853 = vadd.f32 %v1605, %v1801
      %v1854 = vadd.f32 %v1606, %v1804
      %v1855 = vadd.f32 %v1607, %v1806
      %v1856 = vadd.f32 %v1608, %v1809
      %v1857 = vadd.f32 %v1609, %v1811
      %v1858 = vadd.f32 %v1610, %v1814
      %v1859 = vadd.f32 %v1611, %v1816
      %v1860 = vadd.f32 %v1612, %v1819
      %v1861 = vadd.f32 %v1613, %v1821
      %v1862 = vadd.f32 %v1614, %v1824
      %v1863 = vadd.f32 %v1615, %v1826
      %v1864 = vld [vmem:[%s192 + $0x25] sm:$0xff]
      %v1865 = vld [vmem:[%s192 + $0x2d] sm:$0xff]
      %v1866 = vld [vmem:[%s192 + $0x35] sm:$0xff]
      %v1867 = vld [vmem:[%s192 + $0x3d] sm:$0xff]
      %v1868 = vld [vmem:[%s192 + $0x45] sm:$0xff]
      %v1869 = vld [vmem:[%s192 + $0x4d] sm:$0xff]
      %v1870 = vld [vmem:[%s192 + $0x55] sm:$0xff]
      %v1871 = vld [vmem:[%s192 + $0x5d] sm:$0xff]
      %v1872 = vld [vmem:[%s192 + $0x65] sm:$0xff]
      %v1873 = vld [vmem:[%s192 + $0x6d] sm:$0xff]
      %v1874 = vld [vmem:[%s192 + $0x75] sm:$0xff]
      %v1875 = vld [vmem:[%s192 + $0x7d] sm:$0xff]
      %v1876 = vld [vmem:[%s192 + $0x85] sm:$0xff]
      %v1877 = vld [vmem:[%s192 + $0x8d] sm:$0xff]
      %v1878 = vld [vmem:[%s192 + $0x95] sm:$0xff]
      %v1879 = vld [vmem:[%s192 + $0x9d] sm:$0xff]
      %v1880 = vld [vmem:[%s192 + $0xa5] sm:$0xff]
      %v1881 = vld [vmem:[%s192 + $0xad] sm:$0xff]
      %v1882 = vld [vmem:[%s192 + $0xb5] sm:$0xff]
      %v1883 = vld [vmem:[%s192 + $0xbd] sm:$0xff]
      %v1884 = vld [vmem:[%s192 + $0xc5] sm:$0xff]
      %v1885 = vld [vmem:[%s192 + $0xcd] sm:$0xff]
      %v1886 = vld [vmem:[%s192 + $0xd5] sm:$0xff]
      %v1887 = vld [vmem:[%s192 + $0xdd] sm:$0xff]
      %v1888 = vld [vmem:[%s192 + $0xe5] sm:$0xff]
      %v1889 = vld [vmem:[%s192 + $0xed] sm:$0xff]
      %v1890 = vld [vmem:[%s192 + $0xf5] sm:$0xff]
      %v1891 = vld [vmem:[%s192 + $0xfd] sm:$0xff]
      %v1892 = vld [vmem:[%s192 + $0x105] sm:$0xff]
      %v1893 = vld [vmem:[%s192 + $0x10d] sm:$0xff]
      %v1894 = vld [vmem:[%s192 + $0x115] sm:$0xff]
      %v1895 = vld [vmem:[%s192 + $0x11d] sm:$0xff]
      %v1896 = vld [vmem:[%s192 + $0x125] sm:$0xff]
      %v1897 = vld [vmem:[%s192 + $0x12d] sm:$0xff]
      %v1898 = vld [vmem:[%s192 + $0x135] sm:$0xff]
      %v1899 = vld [vmem:[%s192 + $0x13d] sm:$0xff]
      %v1900 = vpack.c.bf16 %v1865, %v1864
      %v1901 = vpack.c.bf16 %v1867, %v1866
      %v1902 = vpack.c.bf16 %v1869, %v1868
      %v1903 = vpack.c.bf16 %v1871, %v1870
      %v1904 = vpack.c.bf16 %v1873, %v1872
      %v1905 = vpack.c.bf16 %v1875, %v1874
      %v1906 = vpack.c.bf16 %v1877, %v1876
      %v1907 = vpack.c.bf16 %v1879, %v1878
      %v1908 = vpack.c.bf16 %v1881, %v1880
      %v1909 = vpack.c.bf16 %v1883, %v1882
      %v1910 = vpack.c.bf16 %v1885, %v1884
      %v1911 = vpack.c.bf16 %v1887, %v1886
      %v1912 = vpack.c.bf16 %v1889, %v1888
      %v1913 = vpack.c.bf16 %v1891, %v1890
      %v1914 = vpack.c.bf16 %v1893, %v1892
      %v1915 = vpack.c.bf16 %v1895, %v1894
      %v1916 = vpack.c.bf16 %v1897, %v1896
      %v1917 = vpack.c.bf16 %v1899, %v1898
      %s1918 = scalar_lea.vmem %s1, 28
      %v1919 = vld [vmem:[%s1918] sm:$0xf]
      %v1921 = vsel %vm310, %v1900, 0
      %v1924 = vsel %vm310, %v1901, 0
      %v1927 = vsel %vm310, %v1902, 0
      %v1930 = vsel %vm310, %v1903, 0
      %v1933 = vsel %vm310, %v1904, 0
      %v1936 = vsel %vm310, %v1905, 0
      %v1939 = vsel %vm310, %v1906, 0
      %v1942 = vsel %vm310, %v1907, 0
      %v1945 = vsel %vm310, %v1908, 0
      %v1948 = vsel %vm310, %v1909, 0
      %v1951 = vsel %vm310, %v1910, 0
      %v1954 = vsel %vm310, %v1911, 0
      %v1957 = vsel %vm310, %v1912, 0
      %v1960 = vsel %vm310, %v1913, 0
      %v1963 = vsel %vm310, %v1914, 0
      %v1966 = vsel %vm310, %v1915, 0
      %v1969 = vsel %vm310, %v1916, 0
      %v1972 = vsel %vm310, %v1917, 0
      %v1975 = vsel %vm365, %v1919, 0
      %1977 = vmatpush.bf16.msra.mxu0 0
      %1978 = vmatpush.bf16.msra.mxu0 0
      %1979 = vmatpush.bf16.msra.mxu0 0
      %1980 = vmatpush.bf16.msra.mxu0 0
      %1981 = vmatpush.bf16.msra.mxu0 0
      %1982 = vmatpush.bf16.msra.mxu0 0
      %1983 = vmatpush.bf16.msra.mxu0 0
      %1984 = vmatpush.bf16.msra.mxu0 %v1975
      %1985 = vmatmul.bf16.gmra.mxu0 %v1921
      %v1986 = vpop.f32.mrf.mxu0
      %v1987 = vadd.f32 0.0, %v1986
      %v1988 = vpop.f32.mrf.mxu0
      %v1989 = vadd.f32 0.0, %v1988
      %1990 = vmatmul.bf16.gmra.mxu0 %v1924
      %v1991 = vpop.f32.mrf.mxu0
      %v1992 = vadd.f32 0.0, %v1991
      %v1993 = vpop.f32.mrf.mxu0
      %v1994 = vadd.f32 0.0, %v1993
      %1995 = vmatmul.bf16.gmra.mxu0 %v1927
      %v1996 = vpop.f32.mrf.mxu0
      %v1997 = vadd.f32 0.0, %v1996
      %v1998 = vpop.f32.mrf.mxu0
      %v1999 = vadd.f32 0.0, %v1998
      %2000 = vmatmul.bf16.gmra.mxu0 %v1930
      %v2001 = vpop.f32.mrf.mxu0
      %v2002 = vadd.f32 0.0, %v2001
      %v2003 = vpop.f32.mrf.mxu0
      %v2004 = vadd.f32 0.0, %v2003
      %2005 = vmatmul.bf16.gmra.mxu0 %v1933
      %v2006 = vpop.f32.mrf.mxu0
      %v2007 = vadd.f32 0.0, %v2006
      %v2008 = vpop.f32.mrf.mxu0
      %v2009 = vadd.f32 0.0, %v2008
      %2010 = vmatmul.bf16.gmra.mxu0 %v1936
      %v2011 = vpop.f32.mrf.mxu0
      %v2012 = vadd.f32 0.0, %v2011
      %v2013 = vpop.f32.mrf.mxu0
      %v2014 = vadd.f32 0.0, %v2013
      %2015 = vmatmul.bf16.gmra.mxu0 %v1939
      %v2016 = vpop.f32.mrf.mxu0
      %v2017 = vadd.f32 0.0, %v2016
      %v2018 = vpop.f32.mrf.mxu0
      %v2019 = vadd.f32 0.0, %v2018
      %2020 = vmatmul.bf16.gmra.mxu0 %v1942
      %v2021 = vpop.f32.mrf.mxu0
      %v2022 = vadd.f32 0.0, %v2021
      %v2023 = vpop.f32.mrf.mxu0
      %v2024 = vadd.f32 0.0, %v2023
      %2025 = vmatmul.bf16.gmra.mxu0 %v1945
      %v2026 = vpop.f32.mrf.mxu0
      %v2027 = vadd.f32 0.0, %v2026
      %v2028 = vpop.f32.mrf.mxu0
      %v2029 = vadd.f32 0.0, %v2028
      %2030 = vmatmul.bf16.gmra.mxu0 %v1948
      %v2031 = vpop.f32.mrf.mxu0
      %v2032 = vadd.f32 0.0, %v2031
      %v2033 = vpop.f32.mrf.mxu0
      %v2034 = vadd.f32 0.0, %v2033
      %2035 = vmatmul.bf16.gmra.mxu0 %v1951
      %v2036 = vpop.f32.mrf.mxu0
      %v2037 = vadd.f32 0.0, %v2036
      %v2038 = vpop.f32.mrf.mxu0
      %v2039 = vadd.f32 0.0, %v2038
      %2040 = vmatmul.bf16.gmra.mxu0 %v1954
      %v2041 = vpop.f32.mrf.mxu0
      %v2042 = vadd.f32 0.0, %v2041
      %v2043 = vpop.f32.mrf.mxu0
      %v2044 = vadd.f32 0.0, %v2043
      %2045 = vmatmul.bf16.gmra.mxu0 %v1957
      %v2046 = vpop.f32.mrf.mxu0
      %v2047 = vadd.f32 0.0, %v2046
      %v2048 = vpop.f32.mrf.mxu0
      %v2049 = vadd.f32 0.0, %v2048
      %2050 = vmatmul.bf16.gmra.mxu0 %v1960
      %v2051 = vpop.f32.mrf.mxu0
      %v2052 = vadd.f32 0.0, %v2051
      %v2053 = vpop.f32.mrf.mxu0
      %v2054 = vadd.f32 0.0, %v2053
      %2055 = vmatmul.bf16.gmra.mxu0 %v1963
      %v2056 = vpop.f32.mrf.mxu0
      %v2057 = vadd.f32 0.0, %v2056
      %v2058 = vpop.f32.mrf.mxu0
      %v2059 = vadd.f32 0.0, %v2058
      %2060 = vmatmul.bf16.gmra.mxu0 %v1966
      %v2061 = vpop.f32.mrf.mxu0
      %v2062 = vadd.f32 0.0, %v2061
      %v2063 = vpop.f32.mrf.mxu0
      %v2064 = vadd.f32 0.0, %v2063
      %2065 = vmatmul.bf16.gmra.mxu0 %v1969
      %v2066 = vpop.f32.mrf.mxu0
      %v2067 = vadd.f32 0.0, %v2066
      %v2068 = vpop.f32.mrf.mxu0
      %v2069 = vadd.f32 0.0, %v2068
      %2070 = vmatmul.bf16.gmra.mxu0 %v1972
      %v2071 = vpop.f32.mrf.mxu0
      %v2072 = vadd.f32 0.0, %v2071
      %v2073 = vpop.f32.mrf.mxu0
      %v2074 = vadd.f32 0.0, %v2073
      %2075 = vdwg.mxu0
      %v2076 = vadd.f32 %v1828, %v1987
      %v2077 = vadd.f32 %v1829, %v1989
      %v2078 = vadd.f32 %v1830, %v1992
      %v2079 = vadd.f32 %v1831, %v1994
      %v2080 = vadd.f32 %v1832, %v1997
      %v2081 = vadd.f32 %v1833, %v1999
      %v2082 = vadd.f32 %v1834, %v2002
      %v2083 = vadd.f32 %v1835, %v2004
      %v2084 = vadd.f32 %v1836, %v2007
      %v2085 = vadd.f32 %v1837, %v2009
      %v2086 = vadd.f32 %v1838, %v2012
      %v2087 = vadd.f32 %v1839, %v2014
      %v2088 = vadd.f32 %v1840, %v2017
      %v2089 = vadd.f32 %v1841, %v2019
      %v2090 = vadd.f32 %v1842, %v2022
      %v2091 = vadd.f32 %v1843, %v2024
      %v2092 = vadd.f32 %v1844, %v2027
      %v2093 = vadd.f32 %v1845, %v2029
      %v2094 = vadd.f32 %v1846, %v2032
      %v2095 = vadd.f32 %v1847, %v2034
      %v2096 = vadd.f32 %v1848, %v2037
      %v2097 = vadd.f32 %v1849, %v2039
      %v2098 = vadd.f32 %v1850, %v2042
      %v2099 = vadd.f32 %v1851, %v2044
      %v2100 = vadd.f32 %v1852, %v2047
      %v2101 = vadd.f32 %v1853, %v2049
      %v2102 = vadd.f32 %v1854, %v2052
      %v2103 = vadd.f32 %v1855, %v2054
      %v2104 = vadd.f32 %v1856, %v2057
      %v2105 = vadd.f32 %v1857, %v2059
      %v2106 = vadd.f32 %v1858, %v2062
      %v2107 = vadd.f32 %v1859, %v2064
      %v2108 = vadd.f32 %v1860, %v2067
      %v2109 = vadd.f32 %v1861, %v2069
      %v2110 = vadd.f32 %v1862, %v2072
      %v2111 = vadd.f32 %v1863, %v2074
      %v2112 = vld [vmem:[%s192 + $0x26] sm:$0xff]
      %v2113 = vld [vmem:[%s192 + $0x2e] sm:$0xff]
      %v2114 = vld [vmem:[%s192 + $0x36] sm:$0xff]
      %v2115 = vld [vmem:[%s192 + $0x3e] sm:$0xff]
      %v2116 = vld [vmem:[%s192 + $0x46] sm:$0xff]
      %v2117 = vld [vmem:[%s192 + $0x4e] sm:$0xff]
      %v2118 = vld [vmem:[%s192 + $0x56] sm:$0xff]
      %v2119 = vld [vmem:[%s192 + $0x5e] sm:$0xff]
      %v2120 = vld [vmem:[%s192 + $0x66] sm:$0xff]
      %v2121 = vld [vmem:[%s192 + $0x6e] sm:$0xff]
      %v2122 = vld [vmem:[%s192 + $0x76] sm:$0xff]
      %v2123 = vld [vmem:[%s192 + $0x7e] sm:$0xff]
      %v2124 = vld [vmem:[%s192 + $0x86] sm:$0xff]
      %v2125 = vld [vmem:[%s192 + $0x8e] sm:$0xff]
      %v2126 = vld [vmem:[%s192 + $0x96] sm:$0xff]
      %v2127 = vld [vmem:[%s192 + $0x9e] sm:$0xff]
      %v2128 = vld [vmem:[%s192 + $0xa6] sm:$0xff]
      %v2129 = vld [vmem:[%s192 + $0xae] sm:$0xff]
      %v2130 = vld [vmem:[%s192 + $0xb6] sm:$0xff]
      %v2131 = vld [vmem:[%s192 + $0xbe] sm:$0xff]
      %v2132 = vld [vmem:[%s192 + $0xc6] sm:$0xff]
      %v2133 = vld [vmem:[%s192 + $0xce] sm:$0xff]
      %v2134 = vld [vmem:[%s192 + $0xd6] sm:$0xff]
      %v2135 = vld [vmem:[%s192 + $0xde] sm:$0xff]
      %v2136 = vld [vmem:[%s192 + $0xe6] sm:$0xff]
      %v2137 = vld [vmem:[%s192 + $0xee] sm:$0xff]
      %v2138 = vld [vmem:[%s192 + $0xf6] sm:$0xff]
      %v2139 = vld [vmem:[%s192 + $0xfe] sm:$0xff]
      %v2140 = vld [vmem:[%s192 + $0x106] sm:$0xff]
      %v2141 = vld [vmem:[%s192 + $0x10e] sm:$0xff]
      %v2142 = vld [vmem:[%s192 + $0x116] sm:$0xff]
      %v2143 = vld [vmem:[%s192 + $0x11e] sm:$0xff]
      %v2144 = vld [vmem:[%s192 + $0x126] sm:$0xff]
      %v2145 = vld [vmem:[%s192 + $0x12e] sm:$0xff]
      %v2146 = vld [vmem:[%s192 + $0x136] sm:$0xff]
      %v2147 = vld [vmem:[%s192 + $0x13e] sm:$0xff]
      %v2148 = vpack.c.bf16 %v2113, %v2112
      %v2149 = vpack.c.bf16 %v2115, %v2114
      %v2150 = vpack.c.bf16 %v2117, %v2116
      %v2151 = vpack.c.bf16 %v2119, %v2118
      %v2152 = vpack.c.bf16 %v2121, %v2120
      %v2153 = vpack.c.bf16 %v2123, %v2122
      %v2154 = vpack.c.bf16 %v2125, %v2124
      %v2155 = vpack.c.bf16 %v2127, %v2126
      %v2156 = vpack.c.bf16 %v2129, %v2128
      %v2157 = vpack.c.bf16 %v2131, %v2130
      %v2158 = vpack.c.bf16 %v2133, %v2132
      %v2159 = vpack.c.bf16 %v2135, %v2134
      %v2160 = vpack.c.bf16 %v2137, %v2136
      %v2161 = vpack.c.bf16 %v2139, %v2138
      %v2162 = vpack.c.bf16 %v2141, %v2140
      %v2163 = vpack.c.bf16 %v2143, %v2142
      %v2164 = vpack.c.bf16 %v2145, %v2144
      %v2165 = vpack.c.bf16 %v2147, %v2146
      %s2166 = scalar_lea.vmem %s1, 32
      %v2167 = vld [vmem:[%s2166] sm:$0xf]
      %v2169 = vsel %vm310, %v2148, 0
      %v2172 = vsel %vm310, %v2149, 0
      %v2175 = vsel %vm310, %v2150, 0
      %v2178 = vsel %vm310, %v2151, 0
      %v2181 = vsel %vm310, %v2152, 0
      %v2184 = vsel %vm310, %v2153, 0
      %v2187 = vsel %vm310, %v2154, 0
      %v2190 = vsel %vm310, %v2155, 0
      %v2193 = vsel %vm310, %v2156, 0
      %v2196 = vsel %vm310, %v2157, 0
      %v2199 = vsel %vm310, %v2158, 0
      %v2202 = vsel %vm310, %v2159, 0
      %v2205 = vsel %vm310, %v2160, 0
      %v2208 = vsel %vm310, %v2161, 0
      %v2211 = vsel %vm310, %v2162, 0
      %v2214 = vsel %vm310, %v2163, 0
      %v2217 = vsel %vm310, %v2164, 0
      %v2220 = vsel %vm310, %v2165, 0
      %v2223 = vsel %vm365, %v2167, 0
      %2225 = vmatpush.bf16.msra.mxu0 0
      %2226 = vmatpush.bf16.msra.mxu0 0
      %2227 = vmatpush.bf16.msra.mxu0 0
      %2228 = vmatpush.bf16.msra.mxu0 0
      %2229 = vmatpush.bf16.msra.mxu0 0
      %2230 = vmatpush.bf16.msra.mxu0 0
      %2231 = vmatpush.bf16.msra.mxu0 0
      %2232 = vmatpush.bf16.msra.mxu0 %v2223
      %2233 = vmatmul.bf16.gmra.mxu0 %v2169
      %v2234 = vpop.f32.mrf.mxu0
      %v2235 = vadd.f32 0.0, %v2234
      %v2236 = vpop.f32.mrf.mxu0
      %v2237 = vadd.f32 0.0, %v2236
      %2238 = vmatmul.bf16.gmra.mxu0 %v2172
      %v2239 = vpop.f32.mrf.mxu0
      %v2240 = vadd.f32 0.0, %v2239
      %v2241 = vpop.f32.mrf.mxu0
      %v2242 = vadd.f32 0.0, %v2241
      %2243 = vmatmul.bf16.gmra.mxu0 %v2175
      %v2244 = vpop.f32.mrf.mxu0
      %v2245 = vadd.f32 0.0, %v2244
      %v2246 = vpop.f32.mrf.mxu0
      %v2247 = vadd.f32 0.0, %v2246
      %2248 = vmatmul.bf16.gmra.mxu0 %v2178
      %v2249 = vpop.f32.mrf.mxu0
      %v2250 = vadd.f32 0.0, %v2249
      %v2251 = vpop.f32.mrf.mxu0
      %v2252 = vadd.f32 0.0, %v2251
      %2253 = vmatmul.bf16.gmra.mxu0 %v2181
      %v2254 = vpop.f32.mrf.mxu0
      %v2255 = vadd.f32 0.0, %v2254
      %v2256 = vpop.f32.mrf.mxu0
      %v2257 = vadd.f32 0.0, %v2256
      %2258 = vmatmul.bf16.gmra.mxu0 %v2184
      %v2259 = vpop.f32.mrf.mxu0
      %v2260 = vadd.f32 0.0, %v2259
      %v2261 = vpop.f32.mrf.mxu0
      %v2262 = vadd.f32 0.0, %v2261
      %2263 = vmatmul.bf16.gmra.mxu0 %v2187
      %v2264 = vpop.f32.mrf.mxu0
      %v2265 = vadd.f32 0.0, %v2264
      %v2266 = vpop.f32.mrf.mxu0
      %v2267 = vadd.f32 0.0, %v2266
      %2268 = vmatmul.bf16.gmra.mxu0 %v2190
      %v2269 = vpop.f32.mrf.mxu0
      %v2270 = vadd.f32 0.0, %v2269
      %v2271 = vpop.f32.mrf.mxu0
      %v2272 = vadd.f32 0.0, %v2271
      %2273 = vmatmul.bf16.gmra.mxu0 %v2193
      %v2274 = vpop.f32.mrf.mxu0
      %v2275 = vadd.f32 0.0, %v2274
      %v2276 = vpop.f32.mrf.mxu0
      %v2277 = vadd.f32 0.0, %v2276
      %2278 = vmatmul.bf16.gmra.mxu0 %v2196
      %v2279 = vpop.f32.mrf.mxu0
      %v2280 = vadd.f32 0.0, %v2279
      %v2281 = vpop.f32.mrf.mxu0
      %v2282 = vadd.f32 0.0, %v2281
      %2283 = vmatmul.bf16.gmra.mxu0 %v2199
      %v2284 = vpop.f32.mrf.mxu0
      %v2285 = vadd.f32 0.0, %v2284
      %v2286 = vpop.f32.mrf.mxu0
      %v2287 = vadd.f32 0.0, %v2286
      %2288 = vmatmul.bf16.gmra.mxu0 %v2202
      %v2289 = vpop.f32.mrf.mxu0
      %v2290 = vadd.f32 0.0, %v2289
      %v2291 = vpop.f32.mrf.mxu0
      %v2292 = vadd.f32 0.0, %v2291
      %2293 = vmatmul.bf16.gmra.mxu0 %v2205
      %v2294 = vpop.f32.mrf.mxu0
      %v2295 = vadd.f32 0.0, %v2294
      %v2296 = vpop.f32.mrf.mxu0
      %v2297 = vadd.f32 0.0, %v2296
      %2298 = vmatmul.bf16.gmra.mxu0 %v2208
      %v2299 = vpop.f32.mrf.mxu0
      %v2300 = vadd.f32 0.0, %v2299
      %v2301 = vpop.f32.mrf.mxu0
      %v2302 = vadd.f32 0.0, %v2301
      %2303 = vmatmul.bf16.gmra.mxu0 %v2211
      %v2304 = vpop.f32.mrf.mxu0
      %v2305 = vadd.f32 0.0, %v2304
      %v2306 = vpop.f32.mrf.mxu0
      %v2307 = vadd.f32 0.0, %v2306
      %2308 = vmatmul.bf16.gmra.mxu0 %v2214
      %v2309 = vpop.f32.mrf.mxu0
      %v2310 = vadd.f32 0.0, %v2309
      %v2311 = vpop.f32.mrf.mxu0
      %v2312 = vadd.f32 0.0, %v2311
      %2313 = vmatmul.bf16.gmra.mxu0 %v2217
      %v2314 = vpop.f32.mrf.mxu0
      %v2315 = vadd.f32 0.0, %v2314
      %v2316 = vpop.f32.mrf.mxu0
      %v2317 = vadd.f32 0.0, %v2316
      %2318 = vmatmul.bf16.gmra.mxu0 %v2220
      %v2319 = vpop.f32.mrf.mxu0
      %v2320 = vadd.f32 0.0, %v2319
      %v2321 = vpop.f32.mrf.mxu0
      %v2322 = vadd.f32 0.0, %v2321
      %2323 = vdwg.mxu0
      %v2324 = vadd.f32 %v2076, %v2235
      %v2325 = vadd.f32 %v2077, %v2237
      %v2326 = vadd.f32 %v2078, %v2240
      %v2327 = vadd.f32 %v2079, %v2242
      %v2328 = vadd.f32 %v2080, %v2245
      %v2329 = vadd.f32 %v2081, %v2247
      %v2330 = vadd.f32 %v2082, %v2250
      %v2331 = vadd.f32 %v2083, %v2252
      %v2332 = vadd.f32 %v2084, %v2255
      %v2333 = vadd.f32 %v2085, %v2257
      %v2334 = vadd.f32 %v2086, %v2260
      %v2335 = vadd.f32 %v2087, %v2262
      %v2336 = vadd.f32 %v2088, %v2265
      %v2337 = vadd.f32 %v2089, %v2267
      %v2338 = vadd.f32 %v2090, %v2270
      %v2339 = vadd.f32 %v2091, %v2272
      %v2340 = vadd.f32 %v2092, %v2275
      %v2341 = vadd.f32 %v2093, %v2277
      %v2342 = vadd.f32 %v2094, %v2280
      %v2343 = vadd.f32 %v2095, %v2282
      %v2344 = vadd.f32 %v2096, %v2285
      %v2345 = vadd.f32 %v2097, %v2287
      %v2346 = vadd.f32 %v2098, %v2290
      %v2347 = vadd.f32 %v2099, %v2292
      %v2348 = vadd.f32 %v2100, %v2295
      %v2349 = vadd.f32 %v2101, %v2297
      %v2350 = vadd.f32 %v2102, %v2300
      %v2351 = vadd.f32 %v2103, %v2302
      %v2352 = vadd.f32 %v2104, %v2305
      %v2353 = vadd.f32 %v2105, %v2307
      %v2354 = vadd.f32 %v2106, %v2310
      %v2355 = vadd.f32 %v2107, %v2312
      %v2356 = vadd.f32 %v2108, %v2315
      %v2357 = vadd.f32 %v2109, %v2317
      %v2358 = vadd.f32 %v2110, %v2320
      %v2359 = vadd.f32 %v2111, %v2322
      %v2360 = vld [vmem:[%s2] sm:$0x1]
      %v2362 = vperm.slane %v2360, 0
      %v2364 = vmul.f32 %v2324, %v2362
      %v2365 = vmul.f32 %v2325, %v2362
      %v2366 = vmul.f32 %v2326, %v2362
      %v2367 = vmul.f32 %v2327, %v2362
      %v2368 = vmul.f32 %v2328, %v2362
      %v2369 = vmul.f32 %v2329, %v2362
      %v2370 = vmul.f32 %v2330, %v2362
      %v2371 = vmul.f32 %v2331, %v2362
      %v2372 = vmul.f32 %v2332, %v2362
      %v2373 = vmul.f32 %v2333, %v2362
      %v2374 = vmul.f32 %v2334, %v2362
      %v2375 = vmul.f32 %v2335, %v2362
      %v2376 = vmul.f32 %v2336, %v2362
      %v2377 = vmul.f32 %v2337, %v2362
      %v2378 = vmul.f32 %v2338, %v2362
      %v2379 = vmul.f32 %v2339, %v2362
      %v2380 = vmul.f32 %v2340, %v2362
      %v2381 = vmul.f32 %v2341, %v2362
      %v2382 = vmul.f32 %v2342, %v2362
      %v2383 = vmul.f32 %v2343, %v2362
      %v2384 = vmul.f32 %v2344, %v2362
      %v2385 = vmul.f32 %v2345, %v2362
      %v2386 = vmul.f32 %v2346, %v2362
      %v2387 = vmul.f32 %v2347, %v2362
      %v2388 = vmul.f32 %v2348, %v2362
      %v2389 = vmul.f32 %v2349, %v2362
      %v2390 = vmul.f32 %v2350, %v2362
      %v2391 = vmul.f32 %v2351, %v2362
      %v2392 = vmul.f32 %v2352, %v2362
      %v2393 = vmul.f32 %v2353, %v2362
      %v2394 = vmul.f32 %v2354, %v2362
      %v2395 = vmul.f32 %v2355, %v2362
      %v2396 = vmul.f32 %v2356, %v2362
      %v2397 = vmul.f32 %v2357, %v2362
      %v2398 = vmul.f32 %v2358, %v2362
      %v2399 = vmul.f32 %v2359, %v2362
      %v2400 = vld [vmem:[%s3] sm:$0x1]
      %v2402 = vperm.slane %v2400, 0
      %v2404 = vadd.f32 %v2364, %v2402
      %v2405 = vadd.f32 %v2365, %v2402
      %v2406 = vadd.f32 %v2366, %v2402
      %v2407 = vadd.f32 %v2367, %v2402
      %v2408 = vadd.f32 %v2368, %v2402
      %v2409 = vadd.f32 %v2369, %v2402
      %v2410 = vadd.f32 %v2370, %v2402
      %v2411 = vadd.f32 %v2371, %v2402
      %v2412 = vadd.f32 %v2372, %v2402
      %v2413 = vadd.f32 %v2373, %v2402
      %v2414 = vadd.f32 %v2374, %v2402
      %v2415 = vadd.f32 %v2375, %v2402
      %v2416 = vadd.f32 %v2376, %v2402
      %v2417 = vadd.f32 %v2377, %v2402
      %v2418 = vadd.f32 %v2378, %v2402
      %v2419 = vadd.f32 %v2379, %v2402
      %v2420 = vadd.f32 %v2380, %v2402
      %v2421 = vadd.f32 %v2381, %v2402
      %v2422 = vadd.f32 %v2382, %v2402
      %v2423 = vadd.f32 %v2383, %v2402
      %v2424 = vadd.f32 %v2384, %v2402
      %v2425 = vadd.f32 %v2385, %v2402
      %v2426 = vadd.f32 %v2386, %v2402
      %v2427 = vadd.f32 %v2387, %v2402
      %v2428 = vadd.f32 %v2388, %v2402
      %v2429 = vadd.f32 %v2389, %v2402
      %v2430 = vadd.f32 %v2390, %v2402
      %v2431 = vadd.f32 %v2391, %v2402
      %v2432 = vadd.f32 %v2392, %v2402
      %v2433 = vadd.f32 %v2393, %v2402
      %v2434 = vadd.f32 %v2394, %v2402
      %v2435 = vadd.f32 %v2395, %v2402
      %v2436 = vadd.f32 %v2396, %v2402
      %v2437 = vadd.f32 %v2397, %v2402
      %v2438 = vadd.f32 %v2398, %v2402
      %v2439 = vadd.f32 %v2399, %v2402
      %vm2440 = vcmp.gt.f32.partialorder %v2404, 0.0
      %vm2441 = vcmp.gt.f32.partialorder %v2405, 0.0
      %vm2442 = vcmp.gt.f32.partialorder %v2406, 0.0
      %vm2443 = vcmp.gt.f32.partialorder %v2407, 0.0
      %vm2444 = vcmp.gt.f32.partialorder %v2408, 0.0
      %vm2445 = vcmp.gt.f32.partialorder %v2409, 0.0
      %vm2446 = vcmp.gt.f32.partialorder %v2410, 0.0
      %vm2447 = vcmp.gt.f32.partialorder %v2411, 0.0
      %vm2448 = vcmp.gt.f32.partialorder %v2412, 0.0
      %vm2449 = vcmp.gt.f32.partialorder %v2413, 0.0
      %vm2450 = vcmp.gt.f32.partialorder %v2414, 0.0
      %vm2451 = vcmp.gt.f32.partialorder %v2415, 0.0
      %vm2452 = vcmp.gt.f32.partialorder %v2416, 0.0
      %vm2453 = vcmp.gt.f32.partialorder %v2417, 0.0
      %vm2454 = vcmp.gt.f32.partialorder %v2418, 0.0
      %vm2455 = vcmp.gt.f32.partialorder %v2419, 0.0
      %vm2456 = vcmp.gt.f32.partialorder %v2420, 0.0
      %vm2457 = vcmp.gt.f32.partialorder %v2421, 0.0
      %vm2458 = vcmp.gt.f32.partialorder %v2422, 0.0
      %vm2459 = vcmp.gt.f32.partialorder %v2423, 0.0
      %vm2460 = vcmp.gt.f32.partialorder %v2424, 0.0
      %vm2461 = vcmp.gt.f32.partialorder %v2425, 0.0
      %vm2462 = vcmp.gt.f32.partialorder %v2426, 0.0
      %vm2463 = vcmp.gt.f32.partialorder %v2427, 0.0
      %vm2464 = vcmp.gt.f32.partialorder %v2428, 0.0
      %vm2465 = vcmp.gt.f32.partialorder %v2429, 0.0
      %vm2466 = vcmp.gt.f32.partialorder %v2430, 0.0
      %vm2467 = vcmp.gt.f32.partialorder %v2431, 0.0
      %vm2468 = vcmp.gt.f32.partialorder %v2432, 0.0
      %vm2469 = vcmp.gt.f32.partialorder %v2433, 0.0
      %vm2470 = vcmp.gt.f32.partialorder %v2434, 0.0
      %vm2471 = vcmp.gt.f32.partialorder %v2435, 0.0
      %vm2472 = vcmp.gt.f32.partialorder %v2436, 0.0
      %vm2473 = vcmp.gt.f32.partialorder %v2437, 0.0
      %vm2474 = vcmp.gt.f32.partialorder %v2438, 0.0
      %vm2475 = vcmp.gt.f32.partialorder %v2439, 0.0
      %v2476 = vmin.f32 %v2404, 0.0
      %v2477 = vmin.f32 %v2405, 0.0
      %v2478 = vmin.f32 %v2406, 0.0
      %v2479 = vmin.f32 %v2407, 0.0
      %v2480 = vmin.f32 %v2408, 0.0
      %v2481 = vmin.f32 %v2409, 0.0
      %v2482 = vmin.f32 %v2410, 0.0
      %v2483 = vmin.f32 %v2411, 0.0
      %v2484 = vmin.f32 %v2412, 0.0
      %v2485 = vmin.f32 %v2413, 0.0
      %v2486 = vmin.f32 %v2414, 0.0
      %v2487 = vmin.f32 %v2415, 0.0
      %v2488 = vmin.f32 %v2416, 0.0
      %v2489 = vmin.f32 %v2417, 0.0
      %v2490 = vmin.f32 %v2418, 0.0
      %v2491 = vmin.f32 %v2419, 0.0
      %v2492 = vmin.f32 %v2420, 0.0
      %v2493 = vmin.f32 %v2421, 0.0
      %v2494 = vmin.f32 %v2422, 0.0
      %v2495 = vmin.f32 %v2423, 0.0
      %v2496 = vmin.f32 %v2424, 0.0
      %v2497 = vmin.f32 %v2425, 0.0
      %v2498 = vmin.f32 %v2426, 0.0
      %v2499 = vmin.f32 %v2427, 0.0
      %v2500 = vmin.f32 %v2428, 0.0
      %v2501 = vmin.f32 %v2429, 0.0
      %v2502 = vmin.f32 %v2430, 0.0
      %v2503 = vmin.f32 %v2431, 0.0
      %v2504 = vmin.f32 %v2432, 0.0
      %v2505 = vmin.f32 %v2433, 0.0
      %v2506 = vmin.f32 %v2434, 0.0
      %v2507 = vmin.f32 %v2435, 0.0
      %v2508 = vmin.f32 %v2436, 0.0
      %v2509 = vmin.f32 %v2437, 0.0
      %v2510 = vmin.f32 %v2438, 0.0
      %v2511 = vmin.f32 %v2439, 0.0
      %v2512 = vmul.f32 %v2476, 1.442695
      %v2513 = vpow.pop %v2512
      %v2514 = vmul.f32 %v2477, 1.442695
      %v2515 = vpow.pop %v2514
      %v2516 = vmul.f32 %v2478, 1.442695
      %v2517 = vpow.pop %v2516
      %v2518 = vmul.f32 %v2479, 1.442695
      %v2519 = vpow.pop %v2518
      %v2520 = vmul.f32 %v2480, 1.442695
      %v2521 = vpow.pop %v2520
      %v2522 = vmul.f32 %v2481, 1.442695
      %v2523 = vpow.pop %v2522
      %v2524 = vmul.f32 %v2482, 1.442695
      %v2525 = vpow.pop %v2524
      %v2526 = vmul.f32 %v2483, 1.442695
      %v2527 = vpow.pop %v2526
      %v2528 = vmul.f32 %v2484, 1.442695
      %v2529 = vpow.pop %v2528
      %v2530 = vmul.f32 %v2485, 1.442695
      %v2531 = vpow.pop %v2530
      %v2532 = vmul.f32 %v2486, 1.442695
      %v2533 = vpow.pop %v2532
      %v2534 = vmul.f32 %v2487, 1.442695
      %v2535 = vpow.pop %v2534
      %v2536 = vmul.f32 %v2488, 1.442695
      %v2537 = vpow.pop %v2536
      %v2538 = vmul.f32 %v2489, 1.442695
      %v2539 = vpow.pop %v2538
      %v2540 = vmul.f32 %v2490, 1.442695
      %v2541 = vpow.pop %v2540
      %v2542 = vmul.f32 %v2491, 1.442695
      %v2543 = vpow.pop %v2542
      %v2544 = vmul.f32 %v2492, 1.442695
      %v2545 = vpow.pop %v2544
      %v2546 = vmul.f32 %v2493, 1.442695
      %v2547 = vpow.pop %v2546
      %v2548 = vmul.f32 %v2494, 1.442695
      %v2549 = vpow.pop %v2548
      %v2550 = vmul.f32 %v2495, 1.442695
      %v2551 = vpow.pop %v2550
      %v2552 = vmul.f32 %v2496, 1.442695
      %v2553 = vpow.pop %v2552
      %v2554 = vmul.f32 %v2497, 1.442695
      %v2555 = vpow.pop %v2554
      %v2556 = vmul.f32 %v2498, 1.442695
      %v2557 = vpow.pop %v2556
      %v2558 = vmul.f32 %v2499, 1.442695
      %v2559 = vpow.pop %v2558
      %v2560 = vmul.f32 %v2500, 1.442695
      %v2561 = vpow.pop %v2560
      %v2562 = vmul.f32 %v2501, 1.442695
      %v2563 = vpow.pop %v2562
      %v2564 = vmul.f32 %v2502, 1.442695
      %v2565 = vpow.pop %v2564
      %v2566 = vmul.f32 %v2503, 1.442695
      %v2567 = vpow.pop %v2566
      %v2568 = vmul.f32 %v2504, 1.442695
      %v2569 = vpow.pop %v2568
      %v2570 = vmul.f32 %v2505, 1.442695
      %v2571 = vpow.pop %v2570
      %v2572 = vmul.f32 %v2506, 1.442695
      %v2573 = vpow.pop %v2572
      %v2574 = vmul.f32 %v2507, 1.442695
      %v2575 = vpow.pop %v2574
      %v2576 = vmul.f32 %v2508, 1.442695
      %v2577 = vpow.pop %v2576
      %v2578 = vmul.f32 %v2509, 1.442695
      %v2579 = vpow.pop %v2578
      %v2580 = vmul.f32 %v2510, 1.442695
      %v2581 = vpow.pop %v2580
      %v2582 = vmul.f32 %v2511, 1.442695
      %v2583 = vpow.pop %v2582
      %v2584 = vsub.f32 %v2513, 1.0
      %v2585 = vsub.f32 %v2515, 1.0
      %v2586 = vsub.f32 %v2517, 1.0
      %v2587 = vsub.f32 %v2519, 1.0
      %v2588 = vsub.f32 %v2521, 1.0
      %v2589 = vsub.f32 %v2523, 1.0
      %v2590 = vsub.f32 %v2525, 1.0
      %v2591 = vsub.f32 %v2527, 1.0
      %v2592 = vsub.f32 %v2529, 1.0
      %v2593 = vsub.f32 %v2531, 1.0
      %v2594 = vsub.f32 %v2533, 1.0
      %v2595 = vsub.f32 %v2535, 1.0
      %v2596 = vsub.f32 %v2537, 1.0
      %v2597 = vsub.f32 %v2539, 1.0
      %v2598 = vsub.f32 %v2541, 1.0
      %v2599 = vsub.f32 %v2543, 1.0
      %v2600 = vsub.f32 %v2545, 1.0
      %v2601 = vsub.f32 %v2547, 1.0
      %v2602 = vsub.f32 %v2549, 1.0
      %v2603 = vsub.f32 %v2551, 1.0
      %v2604 = vsub.f32 %v2553, 1.0
      %v2605 = vsub.f32 %v2555, 1.0
      %v2606 = vsub.f32 %v2557, 1.0
      %v2607 = vsub.f32 %v2559, 1.0
      %v2608 = vsub.f32 %v2561, 1.0
      %v2609 = vsub.f32 %v2563, 1.0
      %v2610 = vsub.f32 %v2565, 1.0
      %v2611 = vsub.f32 %v2567, 1.0
      %v2612 = vsub.f32 %v2569, 1.0
      %v2613 = vsub.f32 %v2571, 1.0
      %v2614 = vsub.f32 %v2573, 1.0
      %v2615 = vsub.f32 %v2575, 1.0
      %v2616 = vsub.f32 %v2577, 1.0
      %v2617 = vsub.f32 %v2579, 1.0
      %v2618 = vsub.f32 %v2581, 1.0
      %v2619 = vsub.f32 %v2583, 1.0
      %v2620 = vsel %vm2440, %v2404, %v2584
      %v2621 = vsel %vm2441, %v2405, %v2585
      %v2622 = vsel %vm2442, %v2406, %v2586
      %v2623 = vsel %vm2443, %v2407, %v2587
      %v2624 = vsel %vm2444, %v2408, %v2588
      %v2625 = vsel %vm2445, %v2409, %v2589
      %v2626 = vsel %vm2446, %v2410, %v2590
      %v2627 = vsel %vm2447, %v2411, %v2591
      %v2628 = vsel %vm2448, %v2412, %v2592
      %v2629 = vsel %vm2449, %v2413, %v2593
      %v2630 = vsel %vm2450, %v2414, %v2594
      %v2631 = vsel %vm2451, %v2415, %v2595
      %v2632 = vsel %vm2452, %v2416, %v2596
      %v2633 = vsel %vm2453, %v2417, %v2597
      %v2634 = vsel %vm2454, %v2418, %v2598
      %v2635 = vsel %vm2455, %v2419, %v2599
      %v2636 = vsel %vm2456, %v2420, %v2600
      %v2637 = vsel %vm2457, %v2421, %v2601
      %v2638 = vsel %vm2458, %v2422, %v2602
      %v2639 = vsel %vm2459, %v2423, %v2603
      %v2640 = vsel %vm2460, %v2424, %v2604
      %v2641 = vsel %vm2461, %v2425, %v2605
      %v2642 = vsel %vm2462, %v2426, %v2606
      %v2643 = vsel %vm2463, %v2427, %v2607
      %v2644 = vsel %vm2464, %v2428, %v2608
      %v2645 = vsel %vm2465, %v2429, %v2609
      %v2646 = vsel %vm2466, %v2430, %v2610
      %v2647 = vsel %vm2467, %v2431, %v2611
      %v2648 = vsel %vm2468, %v2432, %v2612
      %v2649 = vsel %vm2469, %v2433, %v2613
      %v2650 = vsel %vm2470, %v2434, %v2614
      %v2651 = vsel %vm2471, %v2435, %v2615
      %v2652 = vsel %vm2472, %v2436, %v2616
      %v2653 = vsel %vm2473, %v2437, %v2617
      %v2654 = vsel %vm2474, %v2438, %v2618
      %v2655 = vsel %vm2475, %v2439, %v2619
      %2656 = vst [vmem:[%s197] sm:$0xff] %v2620
      %2657 = vst [vmem:[%s197 + $0x8] sm:$0xff] %v2621
      %2658 = vst [vmem:[%s197 + $0x10] sm:$0xff] %v2622
      %2659 = vst [vmem:[%s197 + $0x18] sm:$0xff] %v2623
      %2660 = vst [vmem:[%s197 + $0x20] sm:$0xff] %v2624
      %2661 = vst [vmem:[%s197 + $0x28] sm:$0xff] %v2625
      %2662 = vst [vmem:[%s197 + $0x30] sm:$0xff] %v2626
      %2663 = vst [vmem:[%s197 + $0x38] sm:$0xff] %v2627
      %2664 = vst [vmem:[%s197 + $0x40] sm:$0xff] %v2628
      %2665 = vst [vmem:[%s197 + $0x48] sm:$0xff] %v2629
      %2666 = vst [vmem:[%s197 + $0x50] sm:$0xff] %v2630
      %2667 = vst [vmem:[%s197 + $0x58] sm:$0xff] %v2631
      %2668 = vst [vmem:[%s197 + $0x60] sm:$0xff] %v2632
      %2669 = vst [vmem:[%s197 + $0x68] sm:$0xff] %v2633
      %2670 = vst [vmem:[%s197 + $0x70] sm:$0xff] %v2634
      %2671 = vst [vmem:[%s197 + $0x78] sm:$0xff] %v2635
      %2672 = vst [vmem:[%s197 + $0x80] sm:$0xff] %v2636
      %2673 = vst [vmem:[%s197 + $0x88] sm:$0xff] %v2637
      %2674 = vst [vmem:[%s197 + $0x90] sm:$0xff] %v2638
      %2675 = vst [vmem:[%s197 + $0x98] sm:$0xff] %v2639
      %2676 = vst [vmem:[%s197 + $0xa0] sm:$0xff] %v2640
      %2677 = vst [vmem:[%s197 + $0xa8] sm:$0xff] %v2641
      %2678 = vst [vmem:[%s197 + $0xb0] sm:$0xff] %v2642
      %2679 = vst [vmem:[%s197 + $0xb8] sm:$0xff] %v2643
      %2680 = vst [vmem:[%s197 + $0xc0] sm:$0xff] %v2644
      %2681 = vst [vmem:[%s197 + $0xc8] sm:$0xff] %v2645
      %2682 = vst [vmem:[%s197 + $0xd0] sm:$0xff] %v2646
      %2683 = vst [vmem:[%s197 + $0xd8] sm:$0xff] %v2647
      %2684 = vst [vmem:[%s197 + $0xe0] sm:$0xff] %v2648
      %2685 = vst [vmem:[%s197 + $0xe8] sm:$0xff] %v2649
      %2686 = vst [vmem:[%s197 + $0xf0] sm:$0xff] %v2650
      %2687 = vst [vmem:[%s197 + $0xf8] sm:$0xff] %v2651
      %2688 = vst [vmem:[%s197 + $0x100] sm:$0xff] %v2652
      %2689 = vst [vmem:[%s197 + $0x108] sm:$0xff] %v2653
      %2690 = vst [vmem:[%s197 + $0x110] sm:$0xff] %v2654
      %2691 = vst [vmem:[%s197 + $0x118] sm:$0xff] %v2655
      %p2692 = scmp.lt.s32.totalorder %s15, 1
      %s2693 = scalar_select %p2692, %s15, 1
      %s2694 = smul.addr %s2693, 36
      %s2695 = smul.addr %s2694, 8
      %s2696 = scalar_lea.vmem %s4, %s2695
      // Predicated region
      $region37: #{conv_bn_elu.1} parent=35 // pred_check
        %p2697 = pneg %p122
      $region38: #{conv_bn_elu.1} parent=35 // pred_check_branch
        %2699 = sbr.rel (%p2697) target = $region40
      $region39: #{conv_bn_elu.1} parent=35 // pred_region
        _
      $region40: #{conv_bn_elu.1} parent=35 // pred_fallthru
        _
    $region36: #{conv_bn_elu.1} parent=5 // pred_fallthru
      _
    %p2700 = scmp.le.s32.totalorder 2, %s10
    // Predicated region
    $region41: #{conv_bn_elu.1} parent=5 // pred_check
      %p2701 = pneg %p2700
    $region42: #{conv_bn_elu.1} parent=5 // pred_check_branch
      %2703 = sbr.rel (%p2701) target = $region44
    $region43: #{conv_bn_elu.1} parent=5 // pred_region
      %s2704 = ssub.s32 %s10, 2
      // Predicated region
      $region45: #{conv_bn_elu.1} parent=43 // pred_check
        %p2705 = pneg %p128
      $region46: #{conv_bn_elu.1} parent=43 // pred_check_branch
        %2707 = sbr.rel (%p2705) target = $region48
      $region47: #{conv_bn_elu.1} parent=43 // pred_region
        %p2708 = scmp.lt.s32.totalorder %s16, 1
        %s2709 = scalar_select %p2708, %s16, 1
        %s2710 = smul.addr %s2709, 36
        %s2711 = smul.addr %s2710, 8
        %s2712 = scalar_lea.vmem %s4, %s2711
      $region48: #{conv_bn_elu.1} parent=43 // pred_fallthru
        _
    $region44: #{conv_bn_elu.1} parent=5 // pred_fallthru
      _
  $region6: #{conv_bn_elu.1} parent=0 // loop_footer
    %s14 = sadd.s32 1, %s10
  $region7: #{conv_bn_elu.1} parent=0 // loop_footer_branch
    %9 = sbr.rel target = $region3
  $region8: #{conv_bn_elu.1} parent=0 // loop_exit
    _

</llo_original>
